<compile_context>
chip_gen: v7x
topology: tpu7x:2x2x1
jax: 0.10.0
libtpu: 0.0.40
codegen_flags: <defaults>
</compile_context>

<pallas_src>
import functools

import jax
import jax.numpy as jnp
from jax.experimental import pallas as pl
from jax.experimental.pallas import tpu as pltpu


def _round_up(x, m):
    return (x + m - 1) // m * m


def _vmem_capacity_bytes(default=64 << 20):
    try:
        info = pltpu.get_tpu_info()
    except Exception:
        return default
    for attr in ("vmem_capacity_bytes", "vmem_size_bytes", "vmem_bytes"):
        v = getattr(info, attr, None)
        if v:
            return int(v)
    return default


def _summarizer_kernel(value_ref, mask_ref, w1t_ref, b1_ref, w2t_ref, b2_ref,
                       so_ref, out_ref):
    """Grid = (split, bn_blocks, pixel_tiles). Accumulates [sums|area] per bn."""
    pt = pl.program_id(2)
    bn_tile = value_ref.shape[0]
    qp = so_ref.shape[1]                    # padded logits row count
    l1dt = w1t_ref.dtype                    # layer-1 MXU operand dtype
    l2dt = w2t_ref.dtype                    # layer-2 / pooling MXU operand dtype

    @pl.when(pt == 0)
    def _():
        out_ref[...] = jnp.zeros_like(out_ref)

    # Tiny resident constants (loaded once per grid step).
    sign = so_ref[0]                        # (Qp, 1) f32: +1 / -1 / 0(pad)
    offset = so_ref[1]                      # (Qp, 1) f32:  0 /  1 / 0(pad)
    w1t = w1t_ref[...]
    b1 = b1_ref[...]
    w2t = w2t_ref[...]
    b2 = b2_ref[...]

    def body(i, carry):
        x = value_ref[i].astype(l1dt)                        # (C, TP)
        mk = mask_ref[i]                                     # (2, TP) f32: [m, valid]

        # Layer 1 (input_proj folded into both branches), ReLU, cast at creation.
        h = jnp.maximum(
            jnp.dot(w1t, x, preferred_element_type=jnp.float32) + b1,
            0.0).astype(l2dt)                                # (Hp, TP)

        # Layer 2: rows = [logits (Qp) | feat, const-1, pad (Fp)].
        out2 = jnp.dot(w2t, h, preferred_element_type=jnp.float32) + b2
        logits = out2[:qp]                                   # (Qp, TP) f32
        feat_aug = out2[qp:].astype(l2dt)                    # (Fp, TP), cast at creation

        # Repeated masks via sign/offset constants:
        #   rows <  Q/2 : m ; rows in [Q/2, Q): valid - m ; padded rows: 0.
        # Sigmoid through tanh -> single EUP push.
        s = 0.5 * jnp.tanh(0.5 * logits) + 0.5
        w = (s * (sign * mk[0:1] + offset * mk[1:2])).astype(l2dt)   # (Qp, TP)

        # Weighted pooling: (Qp, Fp) = [sums | area | pad], accumulated in the
        # resident (f32) output block.
        out_ref[i] += jax.lax.dot_general(
            w, feat_aug, (((1,), (1,)), ((), ())),
            preferred_element_type=jnp.float32)
        return carry

    jax.lax.fori_loop(0, bn_tile, body, 0, unroll=True)


def _pack_params(params, num_summaries, l1_dtype, l2_dtype):
    """Fold input_proj, fuse branches, pad to sublane-friendly sizes."""
    Q = num_summaries
    w_in, b_in = params["w_in"], params["b_in"]      # (C, E), (1, E)
    wf1, bf1 = params["wf1"], params["bf1"]          # (E, E), (1, E)
    wf2, bf2 = params["wf2"], params["bf2"]          # (E, E), (1, E)
    ww1, bw1 = params["ww1"], params["bw1"]          # (E, E), (1, E)
    ww2, bw2 = params["ww2"], params["bw2"]          # (E, Q), (1, Q)
    C, E = w_in.shape
    Qp = _round_up(Q, 8)
    Fp = _round_up(E + 1, 8)
    Hp = _round_up(2 * E, 8)

    # Fold input_proj: relu(x@w_in@wf1 + (b_in@wf1 + bf1)) == relu(proj@wf1+bf1)
    wf1f = w_in @ wf1
    bf1f = b_in @ wf1 + bf1
    ww1f = w_in @ ww1
    bw1f = b_in @ ww1 + bw1

    # Fused first layer: hidden = [feat-hidden (E) | weights-hidden (E) | 0-pad].
    w1 = jnp.zeros((C, Hp), jnp.float32)
    w1 = w1.at[:, :E].set(wf1f).at[:, E:2 * E].set(ww1f)
    b1 = jnp.zeros((1, Hp), jnp.float32)
    b1 = b1.at[:, :E].set(bf1f).at[:, E:2 * E].set(bw1f)

    # Fused second layer: rows = [logits (Q) + pad | feat (E), const-1, pad].
    w2 = jnp.zeros((Hp, Qp + Fp), jnp.float32)
    w2 = w2.at[E:2 * E, :Q].set(ww2)          # logits from weights-hidden
    w2 = w2.at[:E, Qp:Qp + E].set(wf2)        # feat from feat-hidden
    b2 = jnp.zeros((1, Qp + Fp), jnp.float32)
    b2 = b2.at[:, :Q].set(bw2)
    b2 = b2.at[:, Qp:Qp + E].set(bf2)
    b2 = b2.at[:, Qp + E].set(1.0)            # area column (constant-1 feature)

    w1t = w1.T.astype(l1_dtype)               # (Hp, C)
    b1t = b1.T.astype(jnp.float32)            # (Hp, 1)
    w2t = w2.T.astype(l2_dtype)               # (Qp+Fp, Hp)
    b2t = b2.T.astype(jnp.float32)            # (Qp+Fp, 1)

    # repeated-mask constants: rep_mask = sign*m + offset*valid
    sign = jnp.zeros((Qp, 1), jnp.float32).at[:Q // 2].set(1.0).at[Q // 2:Q].set(-1.0)
    offs = jnp.zeros((Qp, 1), jnp.float32).at[Q // 2:Q].set(1.0)
    so = jnp.stack([sign, offs], axis=0)      # (2, Qp, 1)
    return w1t, b1t, w2t, b2t, so, Qp, Fp, Hp


def object_summarizer_forward(masks_BNHW, value_BNCHW, params, num_summaries,
                              *, tp_max=2048, compute_dtype=jnp.bfloat16):
    B, N, C, H, W = value_BNCHW.shape
    Q = num_summaries
    E = params["w_in"].shape[1]
    assert Q % 2 == 0, "num_summaries must be even (mask / 1-mask split)"

    # --- glue: F.interpolate(mode='area') to (H, W) ---
    masks = masks_BNHW.astype(jnp.float32)
    mh, mw = masks.shape[-2:]
    if (mh, mw) != (H, W):
        # TODO(synk): general adaptive area interpolation (non-integer factors) not implemented
        assert mh % H == 0 and mw % W == 0
        masks = masks.reshape(B, N, H, mh // H, W, mw // W).mean(axis=(3, 5))

    BN, P = B * N, H * W
    # Layer-1 operand dtype: skip the bf16 cast of the (C, tp) value tile when
    # C is tiny (the MXU pass is N-bound there and the cast is pure VPU work,
    # esp. on v5e which has no bf16 VALU).
    l1_dtype = jnp.float32 if C <= 16 else compute_dtype
    w1t, b1t, w2t, b2t, so, Qp, Fp, Hp = _pack_params(params, Q, l1_dtype, compute_dtype)

    # --- generation-aware VMEM budget / tile sizing ---
    vmem_cap = _vmem_capacity_bytes()
    vmem_limit = min((vmem_cap * 3) // 4, 96 << 20)   # v6e/v5e ~96 MiB, v7x ~48 MiB
    budget = vmem_limit // 3                          # headroom for buffering/spill
    vbytes = jnp.dtype(value_BNCHW.dtype).itemsize
    per_lane = ((C * vbytes + 2 * 4) * 2              # double-buffered value + mask
                + C * 2 + Hp * 6 + (Qp + Fp) * 4 + Fp * 2 + Qp * 10)  # temporaries
    tp_cap = max(128, min(tp_max, (budget // per_lane) // 128 * 128))

    # --- free reshapes only; mask carries [value, validity] rows ---
    # TODO(synk): if the upstream producer can emit bf16 value directly, that
    # halves the HBM read (the f32 value is cast to bf16 inside the kernel).
    value_flat = value_BNCHW.reshape(BN, C, P)
    mask_flat = jnp.concatenate(
        [masks.reshape(BN, 1, P), jnp.ones((BN, 1, P), jnp.float32)], axis=1)

    # Pixel tile: prefer a 128-multiple divisor of P; otherwise pad P and rely
    # on the validity row to zero padded pixels exactly.
    pad_p = 0
    if P <= tp_cap:
        tp = P
    else:
        divs = [d for d in range(128, tp_cap + 1, 128) if P % d == 0]
        if divs:
            tp = divs[-1]
        else:
            tp = tp_cap
            pad_p = (-P) % tp
            # TODO(synk): this pad is an extra HBM pass over value; padded
            # pixels contribute exactly zero via the validity mask row.
            value_flat = jnp.pad(value_flat, ((0, 0), (0, 0), (0, pad_p)))
            mask_flat = jnp.pad(mask_flat, ((0, 0), (0, 0), (0, pad_p)))
    Pp = P + pad_p
    nt_total = Pp // tp

    # Block several BN items per grid step when the feature map fits one tile.
    bn_tile = 1
    if nt_total == 1:
        per_bn = Pp * (C * vbytes + 2 * 4) * 2 + Qp * Fp * 4 * 2
        cap = min(8, max(1, budget // per_bn), (BN // 2) if BN >= 2 else 1)
        for d in range(1, max(1, cap) + 1):
            if BN % d == 0:
                bn_tile = d
    BN_g = BN // bn_tile

    # Split the pixel reduction across both TensorCores when BN is tiny.
    S = 2 if (BN_g < 2 and nt_total >= 2 and nt_total % 2 == 0) else 1
    nt = nt_total // S
    grid = (S, BN_g, nt)

    full2 = lambda s, g, t: (0, 0)
    full3 = lambda s, g, t: (0, 0, 0)

    out = pl.pallas_call(
        _summarizer_kernel,
        out_shape=jax.ShapeDtypeStruct((S, BN, Qp, Fp), jnp.float32),
        grid_spec=pltpu.PrefetchScalarGridSpec(
            num_scalar_prefetch=0,
            grid=grid,
            in_specs=[
                pl.BlockSpec((bn_tile, C, tp), lambda s, g, t: (g, 0, s * nt + t)),
                pl.BlockSpec((bn_tile, 2, tp), lambda s, g, t: (g, 0, s * nt + t)),
                pl.BlockSpec(w1t.shape, full2),
                pl.BlockSpec(b1t.shape, full2),
                pl.BlockSpec(w2t.shape, full2),
                pl.BlockSpec(b2t.shape, full2),
                pl.BlockSpec(so.shape, full3),
            ],
            out_specs=pl.BlockSpec((None, bn_tile, Qp, Fp),
                                   lambda s, g, t: (s, g, 0, 0)),
        ),
        compiler_params=pltpu.CompilerParams(
            dimension_semantics=("parallel", "parallel", "arbitrary"),
            vmem_limit_bytes=vmem_limit),
    )(value_flat, mask_flat, w1t, b1t, w2t, b2t, so)

    out = out[0] if S == 1 else out.sum(axis=0)
    # Padded rows/lanes are exactly zero-contribution; slice them off.
    return out.reshape(B, N, Qp, Fp)[..., :Q, :E + 1]


def _reference_forward(masks_BNHW, value_BNCHW, params, num_summaries):
    """Plain-JAX reference mirroring the PyTorch forward (add_pe=False)."""
    B, N, C, H, W = value_BNCHW.shape
    Q = num_summaries
    masks = masks_BNHW.astype(jnp.float32)
    mh, mw = masks.shape[-2:]
    if (mh, mw) != (H, W):
        masks = masks.reshape(B, N, H, mh // H, W, mw // W).mean(axis=(3, 5))
    m1 = masks[..., None]                                     # (B,N,H,W,1)
    rep = jnp.concatenate([jnp.broadcast_to(m1, (B, N, H, W, Q // 2)),
                           jnp.broadcast_to(1.0 - m1, (B, N, H, W, Q // 2))], axis=-1)
    v = value_BNCHW.transpose(0, 1, 3, 4, 2).astype(jnp.float32)
    proj = v @ params["w_in"] + params["b_in"]
    feat = jnp.maximum(proj @ params["wf1"] + params["bf1"], 0.0) @ params["wf2"] + params["bf2"]
    logits = jnp.maximum(proj @ params["ww1"] + params["bw1"], 0.0) @ params["ww2"] + params["bw2"]
    w = jax.nn.sigmoid(logits) * rep
    sums = jnp.einsum("bkhwq,bkhwc->bkqc", w, feat)
    area = w.reshape(B, N, H * W, Q).sum(2)[..., None]
    return jnp.concatenate([sums, area], axis=-1)


def _init_params(key, value_dim, embed_dim, num_summaries):
    ks = jax.random.split(key, 10)
    s = 0.1
    return {
        "w_in": s * jax.random.normal(ks[0], (value_dim, embed_dim), jnp.float32),
        "b_in": s * jax.random.normal(ks[1], (1, embed_dim), jnp.float32),
        "wf1": s * jax.random.normal(ks[2], (embed_dim, embed_dim), jnp.float32),
        "bf1": s * jax.random.normal(ks[3], (1, embed_dim), jnp.float32),
        "wf2": s * jax.random.normal(ks[4], (embed_dim, embed_dim), jnp.float32),
        "bf2": s * jax.random.normal(ks[5], (1, embed_dim), jnp.float32),
        "ww1": s * jax.random.normal(ks[6], (embed_dim, embed_dim), jnp.float32),
        "bw1": s * jax.random.normal(ks[7], (1, embed_dim), jnp.float32),
        "ww2": s * jax.random.normal(ks[8], (embed_dim, num_summaries), jnp.float32),
        "bw2": s * jax.random.normal(ks[9], (1, num_summaries), jnp.float32),
    }


if __name__ == "__main__":
    configs = [
        # BN=4, one pixel tile -> exercises bn-blocking + mask area-interp glue.
        dict(B=2, N=2, C=8, E=32, Q=8, H=16, W=16, mask_hw=(32, 32), tp_max=2048),
        # BN=1, 4 pixel tiles -> exercises the 2-way reduction split + accumulation.
        dict(B=1, N=1, C=8, E=32, Q=8, H=32, W=32, mask_hw=None, tp_max=256),
        # P=324 has no 128-multiple divisor -> exercises pixel padding + validity mask.
        dict(B=1, N=2, C=8, E=32, Q=8, H=18, W=18, mask_hw=None, tp_max=128),
    ]

    for idx, cfg in enumerate(configs):
        B, N, C, E, Q = cfg["B"], cfg["N"], cfg["C"], cfg["E"], cfg["Q"]
        H, W = cfg["H"], cfg["W"]
        mh, mw = cfg["mask_hw"] if cfg["mask_hw"] else (H, W)

        key = jax.random.PRNGKey(idx)
        k1, k2, k3 = jax.random.split(key, 3)
        params = _init_params(k1, C, E, Q)
        masks_BNHW = jax.nn.sigmoid(jax.random.normal(k2, (B, N, mh, mw), jnp.float32))
        value_BNCHW = jax.random.normal(k3, (B, N, C, H, W), jnp.float32)

        ref = _reference_forward(masks_BNHW, value_BNCHW, params, Q)

        # f32 compute path: tight check against the plain-JAX reference.
        fwd_f32 = jax.jit(functools.partial(
            object_summarizer_forward, params=params, num_summaries=Q,
            tp_max=cfg["tp_max"], compute_dtype=jnp.float32))
        out_f32 = jax.block_until_ready(fwd_f32(masks_BNHW, value_BNCHW))
        assert out_f32.shape == (B, N, Q, E + 1)
        assert jnp.allclose(out_f32, ref, atol=1e-3, rtol=1e-3), f"f32 mismatch cfg {idx}"

        if idx == 0:
            # bf16 matmul operands (default): looser tolerance.
            fwd_bf16 = jax.jit(functools.partial(
                object_summarizer_forward, params=params, num_summaries=Q,
                tp_max=cfg["tp_max"]))
            out_bf16 = jax.block_until_ready(fwd_bf16(masks_BNHW, value_BNCHW))
            assert out_bf16.shape == (B, N, Q, E + 1)
            assert jnp.allclose(out_bf16, ref, atol=2e-1, rtol=5e-2), "bf16 mismatch"

    print("KERNEL_OK")
</pallas_src>

<mosaic_0001>
module attributes {stable_mosaic.version = 11 : i64} {
  func.func @_summarizer_kernel(%arg0: i32, %arg1: i32, %arg2: i32, %arg3: memref<2x8x256xf32, #tpu.memory_space<vmem>>, %arg4: memref<2x2x256xf32, #tpu.memory_space<vmem>>, %arg5: memref<64x8xf32, #tpu.memory_space<vmem>>, %arg6: memref<64x1xf32, #tpu.memory_space<vmem>>, %arg7: memref<48x64xf32, #tpu.memory_space<vmem>>, %arg8: memref<48x1xf32, #tpu.memory_space<vmem>>, %arg9: memref<2x8x1xf32, #tpu.memory_space<vmem>>, %arg10: memref<1x2x8x40xf32, #tpu.memory_space<vmem>>) attributes {dimension_semantics = [#tpu.dimension_semantics<parallel>, #tpu.dimension_semantics<parallel>, #tpu.dimension_semantics<arbitrary>], iteration_bounds = array<i64: 1, 2, 1>, scalar_prefetch = 0 : i64, scratch_operands = 0 : i64, tpu.core_type = #tpu.core_type<tc>, window_params = [{transform_indices = @transform_0, window_bounds = array<i64: 2, 8, 256>}, {transform_indices = @transform_1, window_bounds = array<i64: 2, 2, 256>}, {pipeline_mode = #tpu.pipeline_mode<synchronous>, transform_indices = @transform_2, window_bounds = array<i64: 64, 8>}, {pipeline_mode = #tpu.pipeline_mode<synchronous>, transform_indices = @transform_3, window_bounds = array<i64: 64, 1>}, {pipeline_mode = #tpu.pipeline_mode<synchronous>, transform_indices = @transform_4, window_bounds = array<i64: 48, 64>}, {pipeline_mode = #tpu.pipeline_mode<synchronous>, transform_indices = @transform_5, window_bounds = array<i64: 48, 1>}, {pipeline_mode = #tpu.pipeline_mode<synchronous>, transform_indices = @transform_6, window_bounds = array<i64: 2, 8, 1>}, {transform_indices = @transform_7, window_bounds = array<i64: 1, 2, 8, 40>}]} {
    %c0_i32 = arith.constant 0 : i32
    %0 = arith.cmpi eq, %arg2, %c0_i32 : i32
    %1 = arith.extui %0 : i1 to i32
    %c0_i32_0 = arith.constant 0 : i32
    %2 = arith.cmpi ne, %1, %c0_i32_0 : i32
    scf.if %2 {
      %cst_47 = arith.constant 0.000000e+00 : f32
      %95 = vector.broadcast %cst_47 : f32 to vector<2x8x40xf32>
      %c0_48 = arith.constant 0 : index
      %c0_49 = arith.constant 0 : index
      %c0_50 = arith.constant 0 : index
      %c0_51 = arith.constant 0 : index
      %96 = vector.load %arg10[%c0_48, %c0_49, %c0_50, %c0_51] : memref<1x2x8x40xf32, #tpu.memory_space<vmem>>, vector<1x2x8x40xf32>
      %97 = vector.shape_cast %96 : vector<1x2x8x40xf32> to vector<2x8x40xf32>
      %98 = vector.shape_cast %95 : vector<2x8x40xf32> to vector<1x2x8x40xf32>
      tpu.vector_store %arg10[%c0_48, %c0_49, %c0_50, %c0_51], %98 {strides = array<i32>} : memref<1x2x8x40xf32, #tpu.memory_space<vmem>>, vector<1x2x8x40xf32>,
    } else {
    }
    %c0 = arith.constant 0 : index
    %c0_1 = arith.constant 0 : index
    %c0_2 = arith.constant 0 : index
    %3 = vector.load %arg9[%c0, %c0_1, %c0_2] : memref<2x8x1xf32, #tpu.memory_space<vmem>>, vector<1x8x1xf32>
    %4 = vector.shape_cast %3 : vector<1x8x1xf32> to vector<8x1xf32>
    %c1 = arith.constant 1 : index
    %c0_3 = arith.constant 0 : index
    %c0_4 = arith.constant 0 : index
    %5 = vector.load %arg9[%c1, %c0_3, %c0_4] : memref<2x8x1xf32, #tpu.memory_space<vmem>>, vector<1x8x1xf32>
    %6 = vector.shape_cast %5 : vector<1x8x1xf32> to vector<8x1xf32>
    %c0_5 = arith.constant 0 : index
    %c0_6 = arith.constant 0 : index
    %7 = vector.load %arg5[%c0_5, %c0_6] : memref<64x8xf32, #tpu.memory_space<vmem>>, vector<64x8xf32>
    %c0_7 = arith.constant 0 : index
    %c0_8 = arith.constant 0 : index
    %8 = vector.load %arg6[%c0_7, %c0_8] : memref<64x1xf32, #tpu.memory_space<vmem>>, vector<64x1xf32>
    %c0_9 = arith.constant 0 : index
    %c0_10 = arith.constant 0 : index
    %9 = vector.load %arg7[%c0_9, %c0_10] : memref<48x64xf32, #tpu.memory_space<vmem>>, vector<48x64xf32>
    %c0_11 = arith.constant 0 : index
    %c0_12 = arith.constant 0 : index
    %10 = vector.load %arg8[%c0_11, %c0_12] : memref<48x1xf32, #tpu.memory_space<vmem>>, vector<48x1xf32>
    %c0_i32_13 = arith.constant 0 : i32
    %11 = arith.index_cast %c0_i32_13 : i32 to index
    %c0_14 = arith.constant 0 : index
    %c0_15 = arith.constant 0 : index
    %12 = vector.load %arg3[%11, %c0_14, %c0_15] : memref<2x8x256xf32, #tpu.memory_space<vmem>>, vector<1x8x256xf32>
    %13 = vector.shape_cast %12 : vector<1x8x256xf32> to vector<8x256xf32>
    %14 = arith.index_cast %c0_i32_13 : i32 to index
    %c0_16 = arith.constant 0 : index
    %c0_17 = arith.constant 0 : index
    %15 = vector.load %arg4[%14, %c0_16, %c0_17] : memref<2x2x256xf32, #tpu.memory_space<vmem>>, vector<1x2x256xf32>
    %16 = vector.shape_cast %15 : vector<1x2x256xf32> to vector<2x256xf32>
    %cst = arith.constant dense<0.000000e+00> : vector<64x256xf32>
    %17 = tpu.matmul %7, %13, %cst {dimension_numbers = #tpu.dot_dimension_numbers<[1], [0], [0], [1], [0, 0, 1, 1], [], []>} : vector<64x8xf32>, vector<8x256xf32>, vector<64x256xf32> -> vector<64x256xf32>
    %18 = vector.broadcast %8 : vector<64x1xf32> to vector<64x256xf32>
    %19 = arith.addf %17, %18 : vector<64x256xf32>
    %cst_18 = arith.constant 0.000000e+00 : f32
    %20 = vector.broadcast %cst_18 : f32 to vector<64x256xf32>
    %21 = arith.maximumf %19, %20 : vector<64x256xf32>
    %cst_19 = arith.constant dense<0.000000e+00> : vector<48x256xf32>
    %22 = tpu.matmul %9, %21, %cst_19 {dimension_numbers = #tpu.dot_dimension_numbers<[1], [0], [0], [1], [0, 0, 1, 1], [], []>} : vector<48x64xf32>, vector<64x256xf32>, vector<48x256xf32> -> vector<48x256xf32>
    %23 = vector.broadcast %10 : vector<48x1xf32> to vector<48x256xf32>
    %24 = arith.addf %22, %23 : vector<48x256xf32>
    %25 = vector.extract_strided_slice %24 {offsets = [0, 0], sizes = [8, 256], strides = [1, 1]} : vector<48x256xf32> to vector<8x256xf32>
    %26 = vector.extract_strided_slice %24 {offsets = [8, 0], sizes = [40, 256], strides = [1, 1]} : vector<48x256xf32> to vector<40x256xf32>
    %cst_20 = arith.constant 5.000000e-01 : f32
    %27 = vector.broadcast %cst_20 : f32 to vector<8x256xf32>
    %28 = arith.mulf %27, %25 : vector<8x256xf32>
    %29 = math.tanh %28 : vector<8x256xf32>
    %cst_21 = arith.constant 5.000000e-01 : f32
    %30 = vector.broadcast %cst_21 : f32 to vector<8x256xf32>
    %31 = arith.mulf %30, %29 : vector<8x256xf32>
    %cst_22 = arith.constant 5.000000e-01 : f32
    %32 = vector.broadcast %cst_22 : f32 to vector<8x256xf32>
    %33 = arith.addf %31, %32 : vector<8x256xf32>
    %34 = vector.extract_strided_slice %16 {offsets = [0, 0], sizes = [1, 256], strides = [1, 1]} : vector<2x256xf32> to vector<1x256xf32>
    %35 = vector.broadcast %4 : vector<8x1xf32> to vector<8x256xf32>
    %36 = vector.broadcast %34 : vector<1x256xf32> to vector<8x256xf32>
    %37 = arith.mulf %35, %36 : vector<8x256xf32>
    %38 = vector.extract_strided_slice %16 {offsets = [1, 0], sizes = [1, 256], strides = [1, 1]} : vector<2x256xf32> to vector<1x256xf32>
    %39 = vector.broadcast %6 : vector<8x1xf32> to vector<8x256xf32>
    %40 = vector.broadcast %38 : vector<1x256xf32> to vector<8x256xf32>
    %41 = arith.mulf %39, %40 : vector<8x256xf32>
    %42 = arith.addf %37, %41 : vector<8x256xf32>
    %43 = arith.mulf %33, %42 : vector<8x256xf32>
    %c0_23 = arith.constant 0 : index
    %44 = arith.index_cast %c0_i32_13 : i32 to index
    %c0_24 = arith.constant 0 : index
    %c0_25 = arith.constant 0 : index
    %45 = vector.load %arg10[%c0_23, %44, %c0_24, %c0_25] : memref<1x2x8x40xf32, #tpu.memory_space<vmem>>, vector<1x1x8x40xf32>
    %46 = vector.shape_cast %45 : vector<1x1x8x40xf32> to vector<8x40xf32>
    %cst_26 = arith.constant dense<0.000000e+00> : vector<8x40xf32>
    %47 = tpu.matmul %43, %26, %cst_26 {dimension_numbers = #tpu.dot_dimension_numbers<[1], [1], [0], [0], [0, 0, 1, 0], [], []>} : vector<8x256xf32>, vector<40x256xf32>, vector<8x40xf32> -> vector<8x40xf32>
    %48 = arith.addf %46, %47 : vector<8x40xf32>
    %c0_27 = arith.constant 0 : index
    %49 = arith.index_cast %c0_i32_13 : i32 to index
    %c0_28 = arith.constant 0 : index
    %c0_29 = arith.constant 0 : index
    %50 = vector.load %arg10[%c0_27, %49, %c0_28, %c0_29] : memref<1x2x8x40xf32, #tpu.memory_space<vmem>>, vector<1x1x8x40xf32>
    %51 = vector.shape_cast %50 : vector<1x1x8x40xf32> to vector<8x40xf32>
    %52 = vector.shape_cast %48 : vector<8x40xf32> to vector<1x1x8x40xf32>
    tpu.vector_store %arg10[%c0_27, %49, %c0_28, %c0_29], %52 {strides = array<i32>} : memref<1x2x8x40xf32, #tpu.memory_space<vmem>>, vector<1x1x8x40xf32>,
    %c1_i32 = arith.constant 1 : i32
    %53 = arith.index_cast %c1_i32 : i32 to index
    %c0_30 = arith.constant 0 : index
    %c0_31 = arith.constant 0 : index
    %54 = vector.load %arg3[%53, %c0_30, %c0_31] : memref<2x8x256xf32, #tpu.memory_space<vmem>>, vector<1x8x256xf32>
    %55 = vector.shape_cast %54 : vector<1x8x256xf32> to vector<8x256xf32>
    %56 = arith.index_cast %c1_i32 : i32 to index
    %c0_32 = arith.constant 0 : index
    %c0_33 = arith.constant 0 : index
    %57 = vector.load %arg4[%56, %c0_32, %c0_33] : memref<2x2x256xf32, #tpu.memory_space<vmem>>, vector<1x2x256xf32>
    %58 = vector.shape_cast %57 : vector<1x2x256xf32> to vector<2x256xf32>
    %cst_34 = arith.constant dense<0.000000e+00> : vector<64x256xf32>
    %59 = tpu.matmul %7, %55, %cst_34 {dimension_numbers = #tpu.dot_dimension_numbers<[1], [0], [0], [1], [0, 0, 1, 1], [], []>} : vector<64x8xf32>, vector<8x256xf32>, vector<64x256xf32> -> vector<64x256xf32>
    %60 = vector.broadcast %8 : vector<64x1xf32> to vector<64x256xf32>
    %61 = arith.addf %59, %60 : vector<64x256xf32>
    %cst_35 = arith.constant 0.000000e+00 : f32
    %62 = vector.broadcast %cst_35 : f32 to vector<64x256xf32>
    %63 = arith.maximumf %61, %62 : vector<64x256xf32>
    %cst_36 = arith.constant dense<0.000000e+00> : vector<48x256xf32>
    %64 = tpu.matmul %9, %63, %cst_36 {dimension_numbers = #tpu.dot_dimension_numbers<[1], [0], [0], [1], [0, 0, 1, 1], [], []>} : vector<48x64xf32>, vector<64x256xf32>, vector<48x256xf32> -> vector<48x256xf32>
    %65 = vector.broadcast %10 : vector<48x1xf32> to vector<48x256xf32>
    %66 = arith.addf %64, %65 : vector<48x256xf32>
    %67 = vector.extract_strided_slice %66 {offsets = [0, 0], sizes = [8, 256], strides = [1, 1]} : vector<48x256xf32> to vector<8x256xf32>
    %68 = vector.extract_strided_slice %66 {offsets = [8, 0], sizes = [40, 256], strides = [1, 1]} : vector<48x256xf32> to vector<40x256xf32>
    %cst_37 = arith.constant 5.000000e-01 : f32
    %69 = vector.broadcast %cst_37 : f32 to vector<8x256xf32>
    %70 = arith.mulf %69, %67 : vector<8x256xf32>
    %71 = math.tanh %70 : vector<8x256xf32>
    %cst_38 = arith.constant 5.000000e-01 : f32
    %72 = vector.broadcast %cst_38 : f32 to vector<8x256xf32>
    %73 = arith.mulf %72, %71 : vector<8x256xf32>
    %cst_39 = arith.constant 5.000000e-01 : f32
    %74 = vector.broadcast %cst_39 : f32 to vector<8x256xf32>
    %75 = arith.addf %73, %74 : vector<8x256xf32>
    %76 = vector.extract_strided_slice %58 {offsets = [0, 0], sizes = [1, 256], strides = [1, 1]} : vector<2x256xf32> to vector<1x256xf32>
    %77 = vector.broadcast %4 : vector<8x1xf32> to vector<8x256xf32>
    %78 = vector.broadcast %76 : vector<1x256xf32> to vector<8x256xf32>
    %79 = arith.mulf %77, %78 : vector<8x256xf32>
    %80 = vector.extract_strided_slice %58 {offsets = [1, 0], sizes = [1, 256], strides = [1, 1]} : vector<2x256xf32> to vector<1x256xf32>
    %81 = vector.broadcast %6 : vector<8x1xf32> to vector<8x256xf32>
    %82 = vector.broadcast %80 : vector<1x256xf32> to vector<8x256xf32>
    %83 = arith.mulf %81, %82 : vector<8x256xf32>
    %84 = arith.addf %79, %83 : vector<8x256xf32>
    %85 = arith.mulf %75, %84 : vector<8x256xf32>
    %c0_40 = arith.constant 0 : index
    %86 = arith.index_cast %c1_i32 : i32 to index
    %c0_41 = arith.constant 0 : index
    %c0_42 = arith.constant 0 : index
    %87 = vector.load %arg10[%c0_40, %86, %c0_41, %c0_42] : memref<1x2x8x40xf32, #tpu.memory_space<vmem>>, vector<1x1x8x40xf32>
    %88 = vector.shape_cast %87 : vector<1x1x8x40xf32> to vector<8x40xf32>
    %cst_43 = arith.constant dense<0.000000e+00> : vector<8x40xf32>
    %89 = tpu.matmul %85, %68, %cst_43 {dimension_numbers = #tpu.dot_dimension_numbers<[1], [1], [0], [0], [0, 0, 1, 0], [], []>} : vector<8x256xf32>, vector<40x256xf32>, vector<8x40xf32> -> vector<8x40xf32>
    %90 = arith.addf %88, %89 : vector<8x40xf32>
    %c0_44 = arith.constant 0 : index
    %91 = arith.index_cast %c1_i32 : i32 to index
    %c0_45 = arith.constant 0 : index
    %c0_46 = arith.constant 0 : index
    %92 = vector.load %arg10[%c0_44, %91, %c0_45, %c0_46] : memref<1x2x8x40xf32, #tpu.memory_space<vmem>>, vector<1x1x8x40xf32>
    %93 = vector.shape_cast %92 : vector<1x1x8x40xf32> to vector<8x40xf32>
    %94 = vector.shape_cast %90 : vector<8x40xf32> to vector<1x1x8x40xf32>
    tpu.vector_store %arg10[%c0_44, %91, %c0_45, %c0_46], %94 {strides = array<i32>} : memref<1x2x8x40xf32, #tpu.memory_space<vmem>>, vector<1x1x8x40xf32>,
    %c2_i32 = arith.constant 2 : i32
    return
  }
  func.func @transform_0(%arg0: i32, %arg1: i32, %arg2: i32) -> (i32, i32, i32) {
    %c1_i32 = arith.constant 1 : i32
    %0 = arith.muli %arg0, %c1_i32 : i32
    %1 = arith.addi %0, %arg2 : i32
    %c0_i32 = arith.constant 0 : i32
    %c0_i32_0 = arith.constant 0 : i32
    return %arg1, %c0_i32, %1 : i32, i32, i32
  }
  func.func @transform_1(%arg0: i32, %arg1: i32, %arg2: i32) -> (i32, i32, i32) {
    %c1_i32 = arith.constant 1 : i32
    %0 = arith.muli %arg0, %c1_i32 : i32
    %1 = arith.addi %0, %arg2 : i32
    %c0_i32 = arith.constant 0 : i32
    %c0_i32_0 = arith.constant 0 : i32
    return %arg1, %c0_i32, %1 : i32, i32, i32
  }
  func.func @transform_2(%arg0: i32, %arg1: i32, %arg2: i32) -> (i32, i32) {
    %c0_i32 = arith.constant 0 : i32
    %c0_i32_0 = arith.constant 0 : i32
    %c0_i32_1 = arith.constant 0 : i32
    return %c0_i32, %c0_i32_0 : i32, i32
  }
  func.func @transform_3(%arg0: i32, %arg1: i32, %arg2: i32) -> (i32, i32) {
    %c0_i32 = arith.constant 0 : i32
    %c0_i32_0 = arith.constant 0 : i32
    %c0_i32_1 = arith.constant 0 : i32
    return %c0_i32, %c0_i32_0 : i32, i32
  }
  func.func @transform_4(%arg0: i32, %arg1: i32, %arg2: i32) -> (i32, i32) {
    %c0_i32 = arith.constant 0 : i32
    %c0_i32_0 = arith.constant 0 : i32
    %c0_i32_1 = arith.constant 0 : i32
    return %c0_i32, %c0_i32_0 : i32, i32
  }
  func.func @transform_5(%arg0: i32, %arg1: i32, %arg2: i32) -> (i32, i32) {
    %c0_i32 = arith.constant 0 : i32
    %c0_i32_0 = arith.constant 0 : i32
    %c0_i32_1 = arith.constant 0 : i32
    return %c0_i32, %c0_i32_0 : i32, i32
  }
  func.func @transform_6(%arg0: i32, %arg1: i32, %arg2: i32) -> (i32, i32, i32) {
    %c0_i32 = arith.constant 0 : i32
    %c0_i32_0 = arith.constant 0 : i32
    %c0_i32_1 = arith.constant 0 : i32
    %c0_i32_2 = arith.constant 0 : i32
    return %c0_i32, %c0_i32_0, %c0_i32_1 : i32, i32, i32
  }
  func.func @transform_7(%arg0: i32, %arg1: i32, %arg2: i32) -> (i32, i32, i32, i32) {
    %c0_i32 = arith.constant 0 : i32
    %c0_i32_0 = arith.constant 0 : i32
    %c0_i32_1 = arith.constant 0 : i32
    return %arg0, %arg1, %c0_i32, %c0_i32_0 : i32, i32, i32, i32
  }
}

</mosaic_0001>

<llo_original>
// kernel: object_summarizer_forward.1
$region0: #{object_summarizer_forward.1}
  #allocation0 [shape = 'u32[]', space=smem, size = 0x4, offset = 0x4, fixed_abs, tag = 'smem constant byte address 0x4 - core index']
  #allocation1 [shape = 'u32[144,128]{1,0:T(1,128)}', space=vmem, size = 0x12000, scoped, tag = 'internal scratch']
  %s0 = inlined_call_operand.vmem [shape: f32[4,8,256], index: 0, kind: input, shape index: {}]
  %s1 = inlined_call_operand.vmem [shape: f32[4,2,256], index: 1, kind: input, shape index: {}]
  %s2 = inlined_call_operand.vmem [shape: f32[64,8], index: 2, kind: input, shape index: {}]
  %s3 = inlined_call_operand.vmem [shape: f32[64,1], index: 3, kind: input, shape index: {}]
  %s4 = inlined_call_operand.vmem [shape: f32[48,64], index: 4, kind: input, shape index: {}]
  %s5 = inlined_call_operand.vmem [shape: f32[48,1], index: 5, kind: input, shape index: {}]
  %s6 = inlined_call_operand.vmem [shape: f32[2,8,1], index: 6, kind: input, shape index: {}]
  %s7 = inlined_call_operand.hbm [shape: f32[1,4,8,40], index: 7, kind: output, shape index: {}]
  %s8 = sld [smem:[#allocation0]]
  $region65: #{object_summarizer_forward.1} parent=0
    _
  %s10 = ssub.s32 1, %s8
  %s11 = scalar_select 0, %s10, %s8
  $region1: #{object_summarizer_forward.1} parent=0
    #allocation2 [shape = 'u8[16384]{0}', space=vmem, size = 0x4000, scoped, tag = 'output window, operand 0']
    #allocation3 [shape = 's32[2]{0}', space=sflag, size = 0x8, scoped, tag = 'scoped memory for object_summarizer_forward.1']
    %12 = vsyncpa [#allocation3], 0
    %s13 = scalar_lea.sflag [#allocation3], 1
    %14 = vsyncpa %s13, 0
    loop: start=0, step=1, limit=4
    $region2: #{object_summarizer_forward.1} parent=1 // loop_pre_header
      _
    $region3: #{object_summarizer_forward.1} parent=1 // loop_header
      %s16 = sphi 0, %s20
      %p17 = scmp.ge.s32.totalorder %s16, 4
      %s23 = sphi 0, %s42
      %s24 = sphi 0, %s38
      %s25 = sphi 0, %s34
      %s26 = sphi 0, %s23
      %s27 = sphi 0, %s24
      %s28 = sphi 0, %s25
      %s29 = sphi 0, %s26
      %s30 = sphi 0, %s27
      %s31 = sphi 0, %s28
      %s49 = sphi 0, %s51
      %s52 = sphi 0, %s49
      %s53 = sphi 0, %s52
      %s69 = sphi 0, %s53
      %s79 = sphi 0, %s81
      %s82 = sphi 0, %s79
      %s83 = sphi 0, %s82
      %s99 = sphi 0, %s83
      %s103 = sphi 0, %s103
      %s105 = sphi 0, %s103
      %s106 = sphi 0, %s105
      %s120 = sphi 0, %s106
      %s124 = sphi 0, %s124
      %s126 = sphi 0, %s124
      %s127 = sphi 0, %s126
      %s141 = sphi 0, %s127
      %s145 = sphi 0, %s145
      %s147 = sphi 0, %s145
      %s148 = sphi 0, %s147
      %s162 = sphi 0, %s148
      %s166 = sphi 0, %s166
      %s168 = sphi 0, %s166
      %s169 = sphi 0, %s168
      %s183 = sphi 0, %s169
      %s187 = sphi 0, %s187
      %s189 = sphi 0, %s187
      %s190 = sphi 0, %s189
      %s204 = sphi 0, %s190
      %s212 = sphi 0, %s214
      %s215 = sphi 0, %s212
      %s216 = sphi 0, %s215
      %s232 = sphi 0, %s216
    $region4: #{object_summarizer_forward.1} parent=1 // loop_header_branch
      %19 = sbr.rel (%p17) target = $region8
    $region5: #{object_summarizer_forward.1} parent=1 // loop_body
      %s21 = ssub.s32 %s16, 1
      %s22 = ssub.s32 %s16, 2
      %s32 = sadd.s32 1, %s25
      %p33 = scmp.ge.s32.totalorder %s32, 1
      %s34 = scalar_select %p33, 0, %s32
      %s35 = sadd.s32 1, %s24
      %s36 = scalar_select %p33, %s35, %s24
      %p37 = scmp.ge.s32.totalorder %s36, 2
      %s38 = scalar_select %p37, 0, %s36
      %s39 = sadd.s32 1, %s23
      %s40 = scalar_select %p37, %s39, %s23
      %p41 = scmp.ge.s32.totalorder %s40, 1
      %s42 = scalar_select %p41, 0, %s40
      %s43 = sadd.s32 %s23, %s25
      %s44 = sadd.s32 %s42, %s34
      %s45 = ssub.s32 %s24, %s38
      %s46 = ssub.s32 %s43, %s44
      %s47 = sor.u32 %s45, %s46
      %p48 = scmp.eq.s32.totalorder %s47, 0
      %s50 = sadd.s32 %s49, 1
      %s51 = scalar_select %p48, %s49, %s50
      %p54 = pneg %p48
      %p55 = scmp.eq.s32.totalorder %s16, 1
      %p56 = por %p54, %p55
      %p57 = scmp.ne.s32.totalorder %s49, %s52
      %p58 = scmp.eq.s32.totalorder %s16, 0
      %p59 = por %p57, %p58
      %p60 = scmp.ne.s32.totalorder %s49, %s52
      %p61 = scmp.eq.s32.totalorder %s21, 1
      %p62 = por %p60, %p61
      %p63 = scmp.ne.s32.totalorder %s52, %s53
      %p64 = scmp.eq.s32.totalorder %s21, 0
      %p65 = por %p63, %p64
      %p66 = scmp.ne.s32.totalorder %s52, %s53
      %p67 = scmp.eq.s32.totalorder %s22, 1
      %p68 = por %p66, %p67
      %p70 = scmp.ne.s32.totalorder %s53, %s69
      %p71 = scmp.eq.s32.totalorder %s22, 0
      %p72 = por %p70, %p71
      %s73 = sadd.s32 %s23, %s25
      %s74 = sadd.s32 %s42, %s34
      %s75 = ssub.s32 %s24, %s38
      %s76 = ssub.s32 %s73, %s74
      %s77 = sor.u32 %s75, %s76
      %p78 = scmp.eq.s32.totalorder %s77, 0
      %s80 = sadd.s32 %s79, 1
      %s81 = scalar_select %p78, %s79, %s80
      %p84 = pneg %p78
      %p85 = scmp.eq.s32.totalorder %s16, 1
      %p86 = por %p84, %p85
      %p87 = scmp.ne.s32.totalorder %s79, %s82
      %p88 = scmp.eq.s32.totalorder %s16, 0
      %p89 = por %p87, %p88
      %p90 = scmp.ne.s32.totalorder %s79, %s82
      %p91 = scmp.eq.s32.totalorder %s21, 1
      %p92 = por %p90, %p91
      %p93 = scmp.ne.s32.totalorder %s82, %s83
      %p94 = scmp.eq.s32.totalorder %s21, 0
      %p95 = por %p93, %p94
      %p96 = scmp.ne.s32.totalorder %s82, %s83
      %p97 = scmp.eq.s32.totalorder %s22, 1
      %p98 = por %p96, %p97
      %p100 = scmp.ne.s32.totalorder %s83, %s99
      %p101 = scmp.eq.s32.totalorder %s22, 0
      %p102 = por %p100, %p101
      %s104 = sadd.s32 %s103, 1
      %p107 = scmp.eq.s32.totalorder %s16, 1
      %p108 = scmp.ne.s32.totalorder %s103, %s105
      %p109 = scmp.eq.s32.totalorder %s16, 0
      %p110 = por %p108, %p109
      %p111 = scmp.ne.s32.totalorder %s103, %s105
      %p112 = scmp.eq.s32.totalorder %s21, 1
      %p113 = por %p111, %p112
      %p114 = scmp.ne.s32.totalorder %s105, %s106
      %p115 = scmp.eq.s32.totalorder %s21, 0
      %p116 = por %p114, %p115
      %p117 = scmp.ne.s32.totalorder %s105, %s106
      %p118 = scmp.eq.s32.totalorder %s22, 1
      %p119 = por %p117, %p118
      %p121 = scmp.ne.s32.totalorder %s106, %s120
      %p122 = scmp.eq.s32.totalorder %s22, 0
      %p123 = por %p121, %p122
      %s125 = sadd.s32 %s124, 1
      %p128 = scmp.eq.s32.totalorder %s16, 1
      %p129 = scmp.ne.s32.totalorder %s124, %s126
      %p130 = scmp.eq.s32.totalorder %s16, 0
      %p131 = por %p129, %p130
      %p132 = scmp.ne.s32.totalorder %s124, %s126
      %p133 = scmp.eq.s32.totalorder %s21, 1
      %p134 = por %p132, %p133
      %p135 = scmp.ne.s32.totalorder %s126, %s127
      %p136 = scmp.eq.s32.totalorder %s21, 0
      %p137 = por %p135, %p136
      %p138 = scmp.ne.s32.totalorder %s126, %s127
      %p139 = scmp.eq.s32.totalorder %s22, 1
      %p140 = por %p138, %p139
      %p142 = scmp.ne.s32.totalorder %s127, %s141
      %p143 = scmp.eq.s32.totalorder %s22, 0
      %p144 = por %p142, %p143
      %s146 = sadd.s32 %s145, 1
      %p149 = scmp.eq.s32.totalorder %s16, 1
      %p150 = scmp.ne.s32.totalorder %s145, %s147
      %p151 = scmp.eq.s32.totalorder %s16, 0
      %p152 = por %p150, %p151
      %p153 = scmp.ne.s32.totalorder %s145, %s147
      %p154 = scmp.eq.s32.totalorder %s21, 1
      %p155 = por %p153, %p154
      %p156 = scmp.ne.s32.totalorder %s147, %s148
      %p157 = scmp.eq.s32.totalorder %s21, 0
      %p158 = por %p156, %p157
      %p159 = scmp.ne.s32.totalorder %s147, %s148
      %p160 = scmp.eq.s32.totalorder %s22, 1
      %p161 = por %p159, %p160
      %p163 = scmp.ne.s32.totalorder %s148, %s162
      %p164 = scmp.eq.s32.totalorder %s22, 0
      %p165 = por %p163, %p164
      %s167 = sadd.s32 %s166, 1
      %p170 = scmp.eq.s32.totalorder %s16, 1
      %p171 = scmp.ne.s32.totalorder %s166, %s168
      %p172 = scmp.eq.s32.totalorder %s16, 0
      %p173 = por %p171, %p172
      %p174 = scmp.ne.s32.totalorder %s166, %s168
      %p175 = scmp.eq.s32.totalorder %s21, 1
      %p176 = por %p174, %p175
      %p177 = scmp.ne.s32.totalorder %s168, %s169
      %p178 = scmp.eq.s32.totalorder %s21, 0
      %p179 = por %p177, %p178
      %p180 = scmp.ne.s32.totalorder %s168, %s169
      %p181 = scmp.eq.s32.totalorder %s22, 1
      %p182 = por %p180, %p181
      %p184 = scmp.ne.s32.totalorder %s169, %s183
      %p185 = scmp.eq.s32.totalorder %s22, 0
      %p186 = por %p184, %p185
      %s188 = sadd.s32 %s187, 1
      %p191 = scmp.eq.s32.totalorder %s16, 1
      %p192 = scmp.ne.s32.totalorder %s187, %s189
      %p193 = scmp.eq.s32.totalorder %s16, 0
      %p194 = por %p192, %p193
      %p195 = scmp.ne.s32.totalorder %s187, %s189
      %p196 = scmp.eq.s32.totalorder %s21, 1
      %p197 = por %p195, %p196
      %p198 = scmp.ne.s32.totalorder %s189, %s190
      %p199 = scmp.eq.s32.totalorder %s21, 0
      %p200 = por %p198, %p199
      %p201 = scmp.ne.s32.totalorder %s189, %s190
      %p202 = scmp.eq.s32.totalorder %s22, 1
      %p203 = por %p201, %p202
      %p205 = scmp.ne.s32.totalorder %s190, %s204
      %p206 = scmp.eq.s32.totalorder %s22, 0
      %p207 = por %p205, %p206
      %s208 = ssub.s32 %s23, %s42
      %s209 = ssub.s32 %s24, %s38
      %s210 = sor.u32 %s208, %s209
      %p211 = scmp.eq.s32.totalorder %s210, 0
      %s213 = sadd.s32 %s212, 1
      %s214 = scalar_select %p211, %s212, %s213
      %p217 = pneg %p211
      %p218 = scmp.eq.s32.totalorder %s16, 1
      %p219 = por %p217, %p218
      %p220 = scmp.ne.s32.totalorder %s212, %s215
      %p221 = scmp.eq.s32.totalorder %s16, 0
      %p222 = por %p220, %p221
      %p223 = scmp.ne.s32.totalorder %s212, %s215
      %p224 = scmp.eq.s32.totalorder %s21, 1
      %p225 = por %p223, %p224
      %p226 = scmp.ne.s32.totalorder %s215, %s216
      %p227 = scmp.eq.s32.totalorder %s21, 0
      %p228 = por %p226, %p227
      %p229 = scmp.ne.s32.totalorder %s215, %s216
      %p230 = scmp.eq.s32.totalorder %s22, 1
      %p231 = por %p229, %p230
      %p233 = scmp.ne.s32.totalorder %s216, %s232
      %p234 = scmp.eq.s32.totalorder %s22, 0
      %p235 = por %p233, %p234
      %p236 = scmp.le.s32.totalorder 1, %s16
      %p237 = scmp.lt.s32.totalorder %s16, 3
      %p238 = pnand %p236, %p237
      %p239 = pneg %p238
      // Predicated region
      $region9: #{object_summarizer_forward.1} parent=5 // pred_check
        _
      $region10: #{object_summarizer_forward.1} parent=5 // pred_check_branch
        %241 = sbr.rel (%p238) target = $region12
      $region11: #{object_summarizer_forward.1} parent=5 // pred_region
        %s242 = ssub.s32 %s16, 1
        // Predicated region
        $region13: #{object_summarizer_forward.1} parent=11 // pred_check
          %p243 = pneg %p116
        $region14: #{object_summarizer_forward.1} parent=11 // pred_check_branch
          %245 = sbr.rel (%p243) target = $region16
        $region15: #{object_summarizer_forward.1} parent=11 // pred_region
          _
        $region16: #{object_summarizer_forward.1} parent=11 // pred_fallthru
          _
        // Predicated region
        $region17: #{object_summarizer_forward.1} parent=11 // pred_check
          %p246 = pneg %p137
        $region18: #{object_summarizer_forward.1} parent=11 // pred_check_branch
          %248 = sbr.rel (%p246) target = $region20
        $region19: #{object_summarizer_forward.1} parent=11 // pred_region
          _
        $region20: #{object_summarizer_forward.1} parent=11 // pred_fallthru
          _
        // Predicated region
        $region21: #{object_summarizer_forward.1} parent=11 // pred_check
          %p249 = pneg %p158
        $region22: #{object_summarizer_forward.1} parent=11 // pred_check_branch
          %251 = sbr.rel (%p249) target = $region24
        $region23: #{object_summarizer_forward.1} parent=11 // pred_region
          _
        $region24: #{object_summarizer_forward.1} parent=11 // pred_fallthru
          _
        // Predicated region
        $region25: #{object_summarizer_forward.1} parent=11 // pred_check
          %p252 = pneg %p179
        $region26: #{object_summarizer_forward.1} parent=11 // pred_check_branch
          %254 = sbr.rel (%p252) target = $region28
        $region27: #{object_summarizer_forward.1} parent=11 // pred_region
          _
        $region28: #{object_summarizer_forward.1} parent=11 // pred_fallthru
          _
        // Predicated region
        $region29: #{object_summarizer_forward.1} parent=11 // pred_check
          %p255 = pneg %p200
        $region30: #{object_summarizer_forward.1} parent=11 // pred_check_branch
          %257 = sbr.rel (%p255) target = $region32
        $region31: #{object_summarizer_forward.1} parent=11 // pred_region
          _
        $region32: #{object_summarizer_forward.1} parent=11 // pred_fallthru
          _
      $region12: #{object_summarizer_forward.1} parent=5 // pred_fallthru
        _
      %p258 = scmp.lt.s32.totalorder %s16, 2
      // Predicated region
      $region33: #{object_summarizer_forward.1} parent=5 // pred_check
        %p259 = pneg %p258
      $region34: #{object_summarizer_forward.1} parent=5 // pred_check_branch
        %261 = sbr.rel (%p259) target = $region36
      $region35: #{object_summarizer_forward.1} parent=5 // pred_region
        // Predicated region
        $region37: #{object_summarizer_forward.1} parent=35 // pred_check
          %p262 = pneg %p59
        $region38: #{object_summarizer_forward.1} parent=35 // pred_check_branch
          %264 = sbr.rel (%p262) target = $region40
        $region39: #{object_summarizer_forward.1} parent=35 // pred_region
          %s265 = sadd.s32 %s23, %s25
          %s266 = smul.u32 2, %s24
          %s267 = smul.u32 2, %s265
          %p268 = scmp.lt.s32.totalorder %s266, 3
          %s269 = scalar_select %p268, %s266, 3
          %p270 = scmp.lt.s32.totalorder %s267, 1
          %s271 = scalar_select %p270, %s267, 1
          %s272 = smul.addr %s269, 2
          %s273 = sadd.s32 %s271, %s272
          %s274 = smul.addr %s273, 8
          %s275 = scalar_lea.vmem %s0, %s274
          %s276 = sadd.s32 %s23, %s25
          %s277 = smul.u32 2, %s24
          %s278 = smul.u32 2, %s276
        $region40: #{object_summarizer_forward.1} parent=35 // pred_fallthru
          _
        // Predicated region
        $region41: #{object_summarizer_forward.1} parent=35 // pred_check
          %p279 = pneg %p89
        $region42: #{object_summarizer_forward.1} parent=35 // pred_check_branch
          %281 = sbr.rel (%p279) target = $region44
        $region43: #{object_summarizer_forward.1} parent=35 // pred_region
          %s282 = sadd.s32 %s23, %s25
          %s283 = smul.u32 2, %s24
          %s284 = smul.u32 2, %s282
          %p285 = scmp.lt.s32.totalorder %s283, 3
          %s286 = scalar_select %p285, %s283, 3
          %p287 = scmp.lt.s32.totalorder %s284, 1
          %s288 = scalar_select %p287, %s284, 1
          %s289 = smul.addr %s286, 2
          %s290 = sadd.s32 %s288, %s289
          %s291 = smul.addr %s290, 2
          %s292 = scalar_lea.vmem %s1, %s291
          %s293 = sadd.s32 %s23, %s25
          %s294 = smul.u32 2, %s24
          %s295 = smul.u32 2, %s293
        $region44: #{object_summarizer_forward.1} parent=35 // pred_fallthru
          _
      $region36: #{object_summarizer_forward.1} parent=5 // pred_fallthru
        _
      %p296 = scmp.le.s32.totalorder 1, %s16
      %p297 = scmp.lt.s32.totalorder %s16, 3
      %p298 = pnand %p296, %p297
      %p299 = pneg %p298
      // Predicated region
      $region45: #{object_summarizer_forward.1} parent=5 // pred_check
        _
      $region46: #{object_summarizer_forward.1} parent=5 // pred_check_branch
        %301 = sbr.rel (%p298) target = $region48
      $region47: #{object_summarizer_forward.1} parent=5 // pred_region
        %s302 = ssub.s32 %s16, 1
        %s303 = sadd.s32 %s26, %s28
        %s304 = smul.u32 2, %s27
        %s305 = smul.u32 2, %s303
        %p306 = scmp.lt.s32.totalorder %s304, 3
        %s307 = scalar_select %p306, %s304, 3
        %p308 = scmp.lt.s32.totalorder %s305, 1
        %s309 = scalar_select %p308, %s305, 1
        %s310 = smul.addr %s307, 2
        %s311 = sadd.s32 %s309, %s310
        %s312 = smul.addr %s311, 8
        %s313 = scalar_lea.vmem %s0, %s312
        %p314 = pneg %p65
        %p315 = pneg %p62
        %s316 = sadd.s32 %s26, %s28
        %s317 = smul.u32 2, %s27
        %s318 = smul.u32 2, %s316
        %p319 = scmp.lt.s32.totalorder %s317, 3
        %s320 = scalar_select %p319, %s317, 3
        %p321 = scmp.lt.s32.totalorder %s318, 1
        %s322 = scalar_select %p321, %s318, 1
        %s323 = smul.addr %s320, 2
        %s324 = sadd.s32 %s322, %s323
        %s325 = smul.addr %s324, 2
        %s326 = scalar_lea.vmem %s1, %s325
        %p327 = pneg %p95
        %p328 = pneg %p92
        %p329 = pneg %p116
        %p330 = pneg %p113
        %p331 = pneg %p137
        %p332 = pneg %p134
        %p333 = pneg %p158
        %p334 = pneg %p155
        %p335 = pneg %p179
        %p336 = pneg %p176
        %p337 = pneg %p200
        %p338 = pneg %p197
        %p339 = pneg %p228
        %p340 = pneg %p225
        %s341 = sand.u32 %s215, 1
        %s342 = scalar_lea.sflag [#allocation3], %s341
        %s343 = sand.u32 %s215, 1
        %s344 = smul.addr %s343, 16
        %s345 = scalar_lea.vmem [#allocation2], %s344
        %s346 = sadd.s32 %s26, %s28
        %s347 = smul.u32 2, %s27
        %s348 = smul.u32 2, %s346
        %p349 = scmp.lt.s32.totalorder %s347, 3
        %s350 = scalar_select %p349, %s347, 3
        %p351 = scmp.lt.s32.totalorder %s348, 1
        %s352 = scalar_select %p351, %s348, 1
        %s353 = smul.addr %s350, 2
        %s354 = sadd.s32 %s352, %s353
        %s355 = smul.addr %s354, 8
        %s356 = scalar_lea.vmem %s0, %s355
        %s357 = sadd.s32 %s26, %s28
        %s358 = smul.u32 2, %s27
        %s359 = smul.u32 2, %s357
        %s360 = sadd.s32 %s26, %s28
        %s361 = smul.u32 2, %s27
        %s362 = smul.u32 2, %s360
        %p363 = scmp.lt.s32.totalorder %s361, 3
        %s364 = scalar_select %p363, %s361, 3
        %p365 = scmp.lt.s32.totalorder %s362, 1
        %s366 = scalar_select %p365, %s362, 1
        %s367 = smul.addr %s364, 2
        %s368 = sadd.s32 %s366, %s367
        %s369 = smul.addr %s368, 2
        %s370 = scalar_lea.vmem %s1, %s369
        %s371 = sadd.s32 %s26, %s28
        %s372 = smul.u32 2, %s27
        %s373 = smul.u32 2, %s371
        %s374 = smul.u32 2, %s27
        %p375 = scmp.eq.s32.totalorder %s28, 0
        // Predicated region
        $region49: #{object_summarizer_forward.1} parent=47 // pred_check
          %p376 = pneg %p375
        $region50: #{object_summarizer_forward.1} parent=47 // pred_check_branch
          %378 = sbr.rel (%p376) target = $region52
        $region51: #{object_summarizer_forward.1} parent=47 // pred_region
          %vm379 = vcmask 326656
          %380 = vst.msk [vmem:[%s345] sm:$0xff] %vm379, 0.0
          %381 = vst.msk [vmem:[%s345 + $0x8] sm:$0xff] %vm379, 0.0
        $region52: #{object_summarizer_forward.1} parent=47 // pred_fallthru
          _
        %v382 = vld [vmem:[%s6] sm:$0xff]
        %s383 = scalar_lea.vmem %s6, 8
        %v384 = vld [vmem:[%s383] sm:$0xff]
        %v385 = vld [vmem:[%s2] sm:$0xff]
        %v386 = vld [vmem:[%s2 + $0x8] sm:$0xff]
        %v387 = vld [vmem:[%s2 + $0x10] sm:$0xff]
        %v388 = vld [vmem:[%s2 + $0x18] sm:$0xff]
        %v389 = vld [vmem:[%s2 + $0x20] sm:$0xff]
        %v390 = vld [vmem:[%s2 + $0x28] sm:$0xff]
        %v391 = vld [vmem:[%s2 + $0x30] sm:$0xff]
        %v392 = vld [vmem:[%s2 + $0x38] sm:$0xff]
        %v393 = vld [vmem:[%s3] sm:$0xff]
        %v394 = vld [vmem:[%s3 + $0x8] sm:$0xff]
        %v395 = vld [vmem:[%s3 + $0x10] sm:$0xff]
        %v396 = vld [vmem:[%s3 + $0x18] sm:$0xff]
        %v397 = vld [vmem:[%s3 + $0x20] sm:$0xff]
        %v398 = vld [vmem:[%s3 + $0x28] sm:$0xff]
        %v399 = vld [vmem:[%s3 + $0x30] sm:$0xff]
        %v400 = vld [vmem:[%s3 + $0x38] sm:$0xff]
        %v401 = vld [vmem:[%s4] sm:$0xff]
        %v402 = vld [vmem:[%s4 + $0x8] sm:$0xff]
        %v403 = vld [vmem:[%s4 + $0x10] sm:$0xff]
        %v404 = vld [vmem:[%s4 + $0x18] sm:$0xff]
        %v405 = vld [vmem:[%s4 + $0x20] sm:$0xff]
        %v406 = vld [vmem:[%s4 + $0x28] sm:$0xff]
        %v407 = vld [vmem:[%s5] sm:$0xff]
        %v408 = vld [vmem:[%s5 + $0x8] sm:$0xff]
        %v409 = vld [vmem:[%s5 + $0x10] sm:$0xff]
        %v410 = vld [vmem:[%s5 + $0x18] sm:$0xff]
        %v411 = vld [vmem:[%s5 + $0x20] sm:$0xff]
        %v412 = vld [vmem:[%s5 + $0x28] sm:$0xff]
        %v413 = vld [vmem:[%s356] sm:$0xff]
        %v414 = vld [vmem:[%s356 + $0x8] sm:$0xff]
        %v415 = vld [vmem:[%s370] sm:$0xf]
        %417 = vset.pattern.permute.xlu0 0
        %418 = vperm.xlu0 %417, %v393
        %v419 = vpop.permute.xlu0 %418
        %422 = vset.pattern.permute.xlu0 0
        %423 = vperm.xlu0 %422, %v394
        %v424 = vpop.permute.xlu0 %423
        %427 = vset.pattern.permute.xlu0 0
        %428 = vperm.xlu0 %427, %v395
        %v429 = vpop.permute.xlu0 %428
        %432 = vset.pattern.permute.xlu0 0
        %433 = vperm.xlu0 %432, %v396
        %v434 = vpop.permute.xlu0 %433
        %437 = vset.pattern.permute.xlu0 0
        %438 = vperm.xlu0 %437, %v397
        %v439 = vpop.permute.xlu0 %438
        %442 = vset.pattern.permute.xlu0 0
        %443 = vperm.xlu0 %442, %v398
        %v444 = vpop.permute.xlu0 %443
        %447 = vset.pattern.permute.xlu0 0
        %448 = vperm.xlu0 %447, %v399
        %v449 = vpop.permute.xlu0 %448
        %452 = vset.pattern.permute.xlu0 0
        %453 = vperm.xlu0 %452, %v400
        %v454 = vpop.permute.xlu0 %453
        %vm456 = vcmask 64512
        %v458 = vsel %vm456, %v385, 0
        %v461 = vsel %vm456, %v386, 0
        %v464 = vsel %vm456, %v387, 0
        %v467 = vsel %vm456, %v388, 0
        %v470 = vsel %vm456, %v389, 0
        %v473 = vsel %vm456, %v390, 0
        %v476 = vsel %vm456, %v391, 0
        %v479 = vsel %vm456, %v392, 0
        %481 = vmatprep.subr.mxu0 %v414
        %482 = vmatpush1.msra.mxu0 %v413
        %483 = vmatprep.subr.mxu0 0.0
        %484 = vmatpush1.msra.mxu0 0.0
        %485 = vmatprep.subr.mxu0 0.0
        %486 = vmatpush1.msra.mxu0 0.0
        %487 = vmatprep.subr.mxu0 0.0
        %488 = vmatpush1.msra.mxu0 0.0
        %489 = vmatprep.subr.mxu0 0.0
        %490 = vmatpush1.msra.mxu0 0.0
        %491 = vmatprep.subr.mxu0 0.0
        %492 = vmatpush1.msra.mxu0 0.0
        %493 = vmatprep.subr.mxu0 0.0
        %494 = vmatpush1.msra.mxu0 0.0
        %495 = vmatprep.subr.mxu0 0.0
        %496 = vmatpush1.msra.mxu0 0.0
        %497 = vmatprep.subr.mxu0 0.0
        %498 = vmatpush1.msra.mxu0 0.0
        %499 = vmatprep.subr.mxu0 0.0
        %500 = vmatpush1.msra.mxu0 0.0
        %501 = vmatprep.subr.mxu0 0.0
        %502 = vmatpush1.msra.mxu0 0.0
        %503 = vmatprep.subr.mxu0 0.0
        %504 = vmatpush1.msra.mxu0 0.0
        %505 = vmatprep.subr.mxu0 0.0
        %506 = vmatpush1.msra.mxu0 0.0
        %507 = vmatprep.subr.mxu0 0.0
        %508 = vmatpush1.msra.mxu0 0.0
        %509 = vmatprep.subr.mxu0 0.0
        %510 = vmatpush1.msra.mxu0 0.0
        %511 = vmatprep.subr.mxu0 0.0
        %512 = vmatpush1.msra.mxu0 0.0
        %513 = vmatprep.subr.mxu0 0.0
        %514 = vmatpush1.msra.mxu0 0.0
        %515 = vmatprep.subr.mxu0 0.0
        %516 = vmatpush1.msra.mxu0 0.0
        %517 = vmatprep.subr.mxu0 0.0
        %518 = vmatpush1.msra.mxu0 0.0
        %519 = vmatprep.subr.mxu0 0.0
        %520 = vmatpush1.msra.mxu0 0.0
        %521 = vmatprep.subr.mxu0 0.0
        %522 = vmatpush1.msra.mxu0 0.0
        %523 = vmatprep.subr.mxu0 0.0
        %524 = vmatpush1.msra.mxu0 0.0
        %525 = vmatprep.subr.mxu0 0.0
        %526 = vmatpush1.msra.mxu0 0.0
        %527 = vmatprep.subr.mxu0 0.0
        %528 = vmatpush1.msra.mxu0 0.0
        %529 = vmatprep.subr.mxu0 0.0
        %530 = vmatpush1.msra.mxu0 0.0
        %531 = vmatprep.subr.mxu0 0.0
        %532 = vmatpush1.msra.mxu0 0.0
        %533 = vmatprep.subr.mxu0 0.0
        %534 = vmatpush1.msra.mxu0 0.0
        %535 = vmatprep.subr.mxu0 0.0
        %536 = vmatpush1.msra.mxu0 0.0
        %537 = vmatprep.subr.mxu0 0.0
        %538 = vmatpush1.msra.mxu0 0.0
        %539 = vmatprep.subr.mxu0 0.0
        %540 = vmatpush1.msra.mxu0 0.0
        %541 = vmatprep.subr.mxu0 0.0
        %542 = vmatpush1.msra.mxu0 0.0
        %543 = vmatprep.subr.mxu0 0.0
        %544 = vmatpush1.msra.mxu0 0.0
        %545 = vmatprep.mubr.f32.mxu0 0.0
        %546 = vmatmul.mubr.f32.gmra.mrb[0].mxu0 %v458
        %v547 = vpop.f32.mrb[0].mxu0
        %v548 = vadd.f32 %v419, %v547
        %v549 = vpop.f32.mrb[0].mxu0
        %v550 = vadd.f32 %v419, %v549
        %551 = vmatprep.mubr.f32.mxu0 0.0
        %552 = vmatmul.mubr.f32.gmra.mrb[0].mxu0 %v461
        %v553 = vpop.f32.mrb[0].mxu0
        %v554 = vadd.f32 %v424, %v553
        %v555 = vpop.f32.mrb[0].mxu0
        %v556 = vadd.f32 %v424, %v555
        %557 = vmatprep.mubr.f32.mxu0 0.0
        %558 = vmatmul.mubr.f32.gmra.mrb[0].mxu0 %v464
        %v559 = vpop.f32.mrb[0].mxu0
        %v560 = vadd.f32 %v429, %v559
        %v561 = vpop.f32.mrb[0].mxu0
        %v562 = vadd.f32 %v429, %v561
        %563 = vmatprep.mubr.f32.mxu0 0.0
        %564 = vmatmul.mubr.f32.gmra.mrb[0].mxu0 %v467
        %v565 = vpop.f32.mrb[0].mxu0
        %v566 = vadd.f32 %v434, %v565
        %v567 = vpop.f32.mrb[0].mxu0
        %v568 = vadd.f32 %v434, %v567
        %569 = vmatprep.mubr.f32.mxu0 0.0
        %570 = vmatmul.mubr.f32.gmra.mrb[0].mxu0 %v470
        %v571 = vpop.f32.mrb[0].mxu0
        %v572 = vadd.f32 %v439, %v571
        %v573 = vpop.f32.mrb[0].mxu0
        %v574 = vadd.f32 %v439, %v573
        %575 = vmatprep.mubr.f32.mxu0 0.0
        %576 = vmatmul.mubr.f32.gmra.mrb[0].mxu0 %v473
        %v577 = vpop.f32.mrb[0].mxu0
        %v578 = vadd.f32 %v444, %v577
        %v579 = vpop.f32.mrb[0].mxu0
        %v580 = vadd.f32 %v444, %v579
        %581 = vmatprep.mubr.f32.mxu0 0.0
        %582 = vmatmul.mubr.f32.gmra.mrb[0].mxu0 %v476
        %v583 = vpop.f32.mrb[0].mxu0
        %v584 = vadd.f32 %v449, %v583
        %v585 = vpop.f32.mrb[0].mxu0
        %v586 = vadd.f32 %v449, %v585
        %587 = vmatprep.mubr.f32.mxu0 0.0
        %588 = vmatmul.mubr.f32.gmra.mrb[0].mxu0 %v479
        %v589 = vpop.f32.mrb[0].mxu0
        %v590 = vadd.f32 %v454, %v589
        %v591 = vpop.f32.mrb[0].mxu0
        %v592 = vadd.f32 %v454, %v591
        %593 = vdwg.mxu0
        %v594 = vmax.f32 %v548, 0.0
        %v595 = vmax.f32 %v550, 0.0
        %v596 = vmax.f32 %v554, 0.0
        %v597 = vmax.f32 %v556, 0.0
        %v598 = vmax.f32 %v560, 0.0
        %v599 = vmax.f32 %v562, 0.0
        %v600 = vmax.f32 %v566, 0.0
        %v601 = vmax.f32 %v568, 0.0
        %v602 = vmax.f32 %v572, 0.0
        %v603 = vmax.f32 %v574, 0.0
        %v604 = vmax.f32 %v578, 0.0
        %v605 = vmax.f32 %v580, 0.0
        %v606 = vmax.f32 %v584, 0.0
        %v607 = vmax.f32 %v586, 0.0
        %v608 = vmax.f32 %v590, 0.0
        %v609 = vmax.f32 %v592, 0.0
        %611 = vset.pattern.permute.xlu0 0
        %612 = vperm.xlu0 %611, %v407
        %v613 = vpop.permute.xlu0 %612
        %616 = vset.pattern.permute.xlu0 0
        %617 = vperm.xlu0 %616, %v408
        %v618 = vpop.permute.xlu0 %617
        %621 = vset.pattern.permute.xlu0 0
        %622 = vperm.xlu0 %621, %v409
        %v623 = vpop.permute.xlu0 %622
        %626 = vset.pattern.permute.xlu0 0
        %627 = vperm.xlu0 %626, %v410
        %v628 = vpop.permute.xlu0 %627
        %631 = vset.pattern.permute.xlu0 0
        %632 = vperm.xlu0 %631, %v411
        %v633 = vpop.permute.xlu0 %632
        %636 = vset.pattern.permute.xlu0 0
        %637 = vperm.xlu0 %636, %v412
        %v638 = vpop.permute.xlu0 %637
        %vm640 = vcmask 523264
        %v642 = vsel %vm640, %v401, 0
        %v645 = vsel %vm640, %v402, 0
        %v648 = vsel %vm640, %v403, 0
        %v651 = vsel %vm640, %v404, 0
        %v654 = vsel %vm640, %v405, 0
        %v657 = vsel %vm640, %v406, 0
        %659 = vmatprep.subr.mxu0 %v595
        %660 = vmatpush1.msra.mxu0 %v594
        %661 = vmatprep.subr.mxu0 %v597
        %662 = vmatpush1.msra.mxu0 %v596
        %663 = vmatprep.subr.mxu0 %v599
        %664 = vmatpush1.msra.mxu0 %v598
        %665 = vmatprep.subr.mxu0 %v601
        %666 = vmatpush1.msra.mxu0 %v600
        %667 = vmatprep.subr.mxu0 %v603
        %668 = vmatpush1.msra.mxu0 %v602
        %669 = vmatprep.subr.mxu0 %v605
        %670 = vmatpush1.msra.mxu0 %v604
        %671 = vmatprep.subr.mxu0 %v607
        %672 = vmatpush1.msra.mxu0 %v606
        %673 = vmatprep.subr.mxu0 %v609
        %674 = vmatpush1.msra.mxu0 %v608
        %675 = vmatprep.subr.mxu0 0.0
        %676 = vmatpush1.msra.mxu0 0.0
        %677 = vmatprep.subr.mxu0 0.0
        %678 = vmatpush1.msra.mxu0 0.0
        %679 = vmatprep.subr.mxu0 0.0
        %680 = vmatpush1.msra.mxu0 0.0
        %681 = vmatprep.subr.mxu0 0.0
        %682 = vmatpush1.msra.mxu0 0.0
        %683 = vmatprep.subr.mxu0 0.0
        %684 = vmatpush1.msra.mxu0 0.0
        %685 = vmatprep.subr.mxu0 0.0
        %686 = vmatpush1.msra.mxu0 0.0
        %687 = vmatprep.subr.mxu0 0.0
        %688 = vmatpush1.msra.mxu0 0.0
        %689 = vmatprep.subr.mxu0 0.0
        %690 = vmatpush1.msra.mxu0 0.0
        %691 = vmatprep.subr.mxu0 0.0
        %692 = vmatpush1.msra.mxu0 0.0
        %693 = vmatprep.subr.mxu0 0.0
        %694 = vmatpush1.msra.mxu0 0.0
        %695 = vmatprep.subr.mxu0 0.0
        %696 = vmatpush1.msra.mxu0 0.0
        %697 = vmatprep.subr.mxu0 0.0
        %698 = vmatpush1.msra.mxu0 0.0
        %699 = vmatprep.subr.mxu0 0.0
        %700 = vmatpush1.msra.mxu0 0.0
        %701 = vmatprep.subr.mxu0 0.0
        %702 = vmatpush1.msra.mxu0 0.0
        %703 = vmatprep.subr.mxu0 0.0
        %704 = vmatpush1.msra.mxu0 0.0
        %705 = vmatprep.subr.mxu0 0.0
        %706 = vmatpush1.msra.mxu0 0.0
        %707 = vmatprep.subr.mxu0 0.0
        %708 = vmatpush1.msra.mxu0 0.0
        %709 = vmatprep.subr.mxu0 0.0
        %710 = vmatpush1.msra.mxu0 0.0
        %711 = vmatprep.subr.mxu0 0.0
        %712 = vmatpush1.msra.mxu0 0.0
        %713 = vmatprep.subr.mxu0 0.0
        %714 = vmatpush1.msra.mxu0 0.0
        %715 = vmatprep.subr.mxu0 0.0
        %716 = vmatpush1.msra.mxu0 0.0
        %717 = vmatprep.subr.mxu0 0.0
        %718 = vmatpush1.msra.mxu0 0.0
        %719 = vmatprep.subr.mxu0 0.0
        %720 = vmatpush1.msra.mxu0 0.0
        %721 = vmatprep.subr.mxu0 0.0
        %722 = vmatpush1.msra.mxu0 0.0
        %723 = vmatprep.mubr.f32.mxu0 0.0
        %724 = vmatmul.mubr.f32.gmra.mrb[0].mxu0 %v642
        %v725 = vpop.f32.mrb[0].mxu0
        %v726 = vadd.f32 %v613, %v725
        %v727 = vpop.f32.mrb[0].mxu0
        %v728 = vadd.f32 %v613, %v727
        %729 = vmatprep.mubr.f32.mxu0 0.0
        %730 = vmatmul.mubr.f32.gmra.mrb[0].mxu0 %v645
        %v731 = vpop.f32.mrb[0].mxu0
        %v732 = vadd.f32 %v618, %v731
        %v733 = vpop.f32.mrb[0].mxu0
        %v734 = vadd.f32 %v618, %v733
        %735 = vmatprep.mubr.f32.mxu0 0.0
        %736 = vmatmul.mubr.f32.gmra.mrb[0].mxu0 %v648
        %v737 = vpop.f32.mrb[0].mxu0
        %v738 = vadd.f32 %v623, %v737
        %v739 = vpop.f32.mrb[0].mxu0
        %v740 = vadd.f32 %v623, %v739
        %741 = vmatprep.mubr.f32.mxu0 0.0
        %742 = vmatmul.mubr.f32.gmra.mrb[0].mxu0 %v651
        %v743 = vpop.f32.mrb[0].mxu0
        %v744 = vadd.f32 %v628, %v743
        %v745 = vpop.f32.mrb[0].mxu0
        %v746 = vadd.f32 %v628, %v745
        %747 = vmatprep.mubr.f32.mxu0 0.0
        %748 = vmatmul.mubr.f32.gmra.mrb[0].mxu0 %v654
        %v749 = vpop.f32.mrb[0].mxu0
        %v750 = vadd.f32 %v633, %v749
        %v751 = vpop.f32.mrb[0].mxu0
        %v752 = vadd.f32 %v633, %v751
        %753 = vmatprep.mubr.f32.mxu0 0.0
        %754 = vmatmul.mubr.f32.gmra.mrb[0].mxu0 %v657
        %v755 = vpop.f32.mrb[0].mxu0
        %v756 = vadd.f32 %v638, %v755
        %v757 = vpop.f32.mrb[0].mxu0
        %v758 = vadd.f32 %v638, %v757
        %759 = vdwg.mxu0
        %v760 = vmul.f32 %v726, 0.5
        %v761 = vmul.f32 %v728, 0.5
        %v762 = vtanh.pop %v760
        %v763 = vtanh.pop %v761
        %v764 = vmul.f32 %v762, 0.5
        %v765 = vmul.f32 %v763, 0.5
        %v766 = vadd.f32 %v764, 0.5
        %v767 = vadd.f32 %v765, 0.5
        %769 = vset.pattern.permute.xlu0 0
        %770 = vperm.xlu0 %769, %v382
        %v771 = vpop.permute.xlu0 %770
        %v774 = vlaneseq
        %v775 = vshrl.u32 %v774, 7
        %v776 = vsub.s32 0, %v775
        %v777 = vrot.slane %v415, %v776
        %v778 = vlaneseq
        %v779 = vshrl.u32 %v778, 7
        %v780 = vsub.s32 2, %v779
        %v781 = vrot.slane %v415, %v780
        %v784 = vlaneseq
        %v785 = vshrl.u32 %v784, 7
        %v786 = vsub.s32 0, %v785
        %v787 = vrot.slane %v777, %v786
        %v788 = vlaneseq
        %v789 = vshrl.u32 %v788, 7
        %v790 = vsub.s32 0, %v789
        %v791 = vrot.slane %v781, %v790
        %v792 = vmul.f32 %v771, %v787
        %v793 = vmul.f32 %v771, %v791
        %795 = vset.pattern.permute.xlu0 0
        %796 = vperm.xlu0 %795, %v384
        %v797 = vpop.permute.xlu0 %796
        %v799 = vlaneseq
        %v800 = vshrl.u32 %v799, 7
        %v801 = vsub.s32 1, %v800
        %v802 = vrot.slane %v415, %v801
        %v803 = vlaneseq
        %v804 = vshrl.u32 %v803, 7
        %v805 = vsub.s32 3, %v804
        %v806 = vrot.slane %v415, %v805
        %v809 = vlaneseq
        %v810 = vshrl.u32 %v809, 7
        %v811 = vsub.s32 1, %v810
        %v812 = vrot.slane %v802, %v811
        %v813 = vlaneseq
        %v814 = vshrl.u32 %v813, 7
        %v815 = vsub.s32 1, %v814
        %v816 = vrot.slane %v806, %v815
        %v817 = vmul.f32 %v797, %v812
        %v818 = vmul.f32 %v797, %v816
        %v819 = vadd.f32 %v792, %v817
        %v820 = vadd.f32 %v793, %v818
        %v821 = vmul.f32 %v766, %v819
        %v822 = vmul.f32 %v767, %v820
        %v823 = vld [vmem:[%s345] sm:$0xff]
        %824 = vmatprep.subr.mxu0 %v734
        %825 = vmatpush1.xpose.msra.mxu0 %v732
        %826 = vmatprep.subr.mxu0 %v740
        %827 = vmatpush1.xpose.msra.mxu0 %v738
        %828 = vmatprep.subr.mxu0 %v746
        %829 = vmatpush1.xpose.msra.mxu0 %v744
        %830 = vmatprep.subr.mxu0 %v752
        %831 = vmatpush1.xpose.msra.mxu0 %v750
        %832 = vmatprep.subr.mxu0 %v758
        %833 = vmatpush1.xpose.msra.mxu0 %v756
        %834 = vmatprep.subr.mxu0 0.0
        %835 = vmatpush1.xpose.msra.mxu0 0.0
        %836 = vmatprep.subr.mxu0 0.0
        %837 = vmatpush1.xpose.msra.mxu0 0.0
        %838 = vmatprep.subr.mxu0 0.0
        %839 = vmatpush1.xpose.msra.mxu0 0.0
        %840 = vmatprep.subr.mxu0 0.0
        %841 = vmatpush1.xpose.msra.mxu0 0.0
        %842 = vmatprep.subr.mxu0 0.0
        %843 = vmatpush1.xpose.msra.mxu0 0.0
        %844 = vmatprep.subr.mxu0 0.0
        %845 = vmatpush1.xpose.msra.mxu0 0.0
        %846 = vmatprep.subr.mxu0 0.0
        %847 = vmatpush1.xpose.msra.mxu0 0.0
        %848 = vmatprep.subr.mxu0 0.0
        %849 = vmatpush1.xpose.msra.mxu0 0.0
        %850 = vmatprep.subr.mxu0 0.0
        %851 = vmatpush1.xpose.msra.mxu0 0.0
        %852 = vmatprep.subr.mxu0 0.0
        %853 = vmatpush1.xpose.msra.mxu0 0.0
        %854 = vmatprep.subr.mxu0 0.0
        %855 = vmatpush1.xpose.msra.mxu0 0.0
        %856 = vmatprep.subr.mxu0 0.0
        %857 = vmatpush1.xpose.msra.mxu0 0.0
        %858 = vmatprep.subr.mxu0 0.0
        %859 = vmatpush1.xpose.msra.mxu0 0.0
        %860 = vmatprep.subr.mxu0 0.0
        %861 = vmatpush1.xpose.msra.mxu0 0.0
        %862 = vmatprep.subr.mxu0 0.0
        %863 = vmatpush1.xpose.msra.mxu0 0.0
        %864 = vmatprep.subr.mxu0 0.0
        %865 = vmatpush1.xpose.msra.mxu0 0.0
        %866 = vmatprep.subr.mxu0 0.0
        %867 = vmatpush1.xpose.msra.mxu0 0.0
        %868 = vmatprep.subr.mxu0 0.0
        %869 = vmatpush1.xpose.msra.mxu0 0.0
        %870 = vmatprep.subr.mxu0 0.0
        %871 = vmatpush1.xpose.msra.mxu0 0.0
        %872 = vmatprep.subr.mxu0 0.0
        %873 = vmatpush1.xpose.msra.mxu0 0.0
        %874 = vmatprep.subr.mxu0 0.0
        %875 = vmatpush1.xpose.msra.mxu0 0.0
        %876 = vmatprep.subr.mxu0 0.0
        %877 = vmatpush1.xpose.msra.mxu0 0.0
        %878 = vmatprep.subr.mxu0 0.0
        %879 = vmatpush1.xpose.msra.mxu0 0.0
        %880 = vmatprep.subr.mxu0 0.0
        %881 = vmatpush1.xpose.msra.mxu0 0.0
        %882 = vmatprep.subr.mxu0 0.0
        %883 = vmatpush1.xpose.msra.mxu0 0.0
        %884 = vmatprep.subr.mxu0 0.0
        %885 = vmatpush1.xpose.msra.mxu0 0.0
        %886 = vmatprep.subr.mxu0 0.0
        %887 = vmatpush1.xpose.msra.mxu0 0.0
        %888 = vmatprep.mubr.f32.mxu0 %v822
        %889 = vmatmul.mubr.f32.gmra.mrb[0].mxu0 %v821
        %v890 = vpop.f32.mrb[0].mxu0
        %v891 = vadd.f32 0.0, %v890
        %v892 = vpop.f32.mrb[0].mxu0
        %893 = vdwg.mxu0
        %v894 = vadd.f32 %v823, %v891
        %vm895 = vcmask 326656
        %896 = vst.msk [vmem:[%s345] sm:$0xff] %vm895, %v894
        %s897 = scalar_lea.vmem %s356, 16
        %v898 = vld [vmem:[%s897] sm:$0xff]
        %v899 = vld [vmem:[%s897 + $0x8] sm:$0xff]
        %s900 = scalar_lea.vmem %s370, 4
        %v901 = vld [vmem:[%s900] sm:$0xf]
        %902 = vmatprep.subr.mxu0 %v899
        %903 = vmatpush1.msra.mxu0 %v898
        %904 = vmatprep.subr.mxu0 0.0
        %905 = vmatpush1.msra.mxu0 0.0
        %906 = vmatprep.subr.mxu0 0.0
        %907 = vmatpush1.msra.mxu0 0.0
        %908 = vmatprep.subr.mxu0 0.0
        %909 = vmatpush1.msra.mxu0 0.0
        %910 = vmatprep.subr.mxu0 0.0
        %911 = vmatpush1.msra.mxu0 0.0
        %912 = vmatprep.subr.mxu0 0.0
        %913 = vmatpush1.msra.mxu0 0.0
        %914 = vmatprep.subr.mxu0 0.0
        %915 = vmatpush1.msra.mxu0 0.0
        %916 = vmatprep.subr.mxu0 0.0
        %917 = vmatpush1.msra.mxu0 0.0
        %918 = vmatprep.subr.mxu0 0.0
        %919 = vmatpush1.msra.mxu0 0.0
        %920 = vmatprep.subr.mxu0 0.0
        %921 = vmatpush1.msra.mxu0 0.0
        %922 = vmatprep.subr.mxu0 0.0
        %923 = vmatpush1.msra.mxu0 0.0
        %924 = vmatprep.subr.mxu0 0.0
        %925 = vmatpush1.msra.mxu0 0.0
        %926 = vmatprep.subr.mxu0 0.0
        %927 = vmatpush1.msra.mxu0 0.0
        %928 = vmatprep.subr.mxu0 0.0
        %929 = vmatpush1.msra.mxu0 0.0
        %930 = vmatprep.subr.mxu0 0.0
        %931 = vmatpush1.msra.mxu0 0.0
        %932 = vmatprep.subr.mxu0 0.0
        %933 = vmatpush1.msra.mxu0 0.0
        %934 = vmatprep.subr.mxu0 0.0
        %935 = vmatpush1.msra.mxu0 0.0
        %936 = vmatprep.subr.mxu0 0.0
        %937 = vmatpush1.msra.mxu0 0.0
        %938 = vmatprep.subr.mxu0 0.0
        %939 = vmatpush1.msra.mxu0 0.0
        %940 = vmatprep.subr.mxu0 0.0
        %941 = vmatpush1.msra.mxu0 0.0
        %942 = vmatprep.subr.mxu0 0.0
        %943 = vmatpush1.msra.mxu0 0.0
        %944 = vmatprep.subr.mxu0 0.0
        %945 = vmatpush1.msra.mxu0 0.0
        %946 = vmatprep.subr.mxu0 0.0
        %947 = vmatpush1.msra.mxu0 0.0
        %948 = vmatprep.subr.mxu0 0.0
        %949 = vmatpush1.msra.mxu0 0.0
        %950 = vmatprep.subr.mxu0 0.0
        %951 = vmatpush1.msra.mxu0 0.0
        %952 = vmatprep.subr.mxu0 0.0
        %953 = vmatpush1.msra.mxu0 0.0
        %954 = vmatprep.subr.mxu0 0.0
        %955 = vmatpush1.msra.mxu0 0.0
        %956 = vmatprep.subr.mxu0 0.0
        %957 = vmatpush1.msra.mxu0 0.0
        %958 = vmatprep.subr.mxu0 0.0
        %959 = vmatpush1.msra.mxu0 0.0
        %960 = vmatprep.subr.mxu0 0.0
        %961 = vmatpush1.msra.mxu0 0.0
        %962 = vmatprep.subr.mxu0 0.0
        %963 = vmatpush1.msra.mxu0 0.0
        %964 = vmatprep.subr.mxu0 0.0
        %965 = vmatpush1.msra.mxu0 0.0
        %966 = vmatprep.mubr.f32.mxu0 0.0
        %967 = vmatmul.mubr.f32.gmra.mrb[0].mxu0 %v458
        %v968 = vpop.f32.mrb[0].mxu0
        %v969 = vadd.f32 %v419, %v968
        %v970 = vpop.f32.mrb[0].mxu0
        %v971 = vadd.f32 %v419, %v970
        %972 = vmatprep.mubr.f32.mxu0 0.0
        %973 = vmatmul.mubr.f32.gmra.mrb[0].mxu0 %v461
        %v974 = vpop.f32.mrb[0].mxu0
        %v975 = vadd.f32 %v424, %v974
        %v976 = vpop.f32.mrb[0].mxu0
        %v977 = vadd.f32 %v424, %v976
        %978 = vmatprep.mubr.f32.mxu0 0.0
        %979 = vmatmul.mubr.f32.gmra.mrb[0].mxu0 %v464
        %v980 = vpop.f32.mrb[0].mxu0
        %v981 = vadd.f32 %v429, %v980
        %v982 = vpop.f32.mrb[0].mxu0
        %v983 = vadd.f32 %v429, %v982
        %984 = vmatprep.mubr.f32.mxu0 0.0
        %985 = vmatmul.mubr.f32.gmra.mrb[0].mxu0 %v467
        %v986 = vpop.f32.mrb[0].mxu0
        %v987 = vadd.f32 %v434, %v986
        %v988 = vpop.f32.mrb[0].mxu0
        %v989 = vadd.f32 %v434, %v988
        %990 = vmatprep.mubr.f32.mxu0 0.0
        %991 = vmatmul.mubr.f32.gmra.mrb[0].mxu0 %v470
        %v992 = vpop.f32.mrb[0].mxu0
        %v993 = vadd.f32 %v439, %v992
        %v994 = vpop.f32.mrb[0].mxu0
        %v995 = vadd.f32 %v439, %v994
        %996 = vmatprep.mubr.f32.mxu0 0.0
        %997 = vmatmul.mubr.f32.gmra.mrb[0].mxu0 %v473
        %v998 = vpop.f32.mrb[0].mxu0
        %v999 = vadd.f32 %v444, %v998
        %v1000 = vpop.f32.mrb[0].mxu0
        %v1001 = vadd.f32 %v444, %v1000
        %1002 = vmatprep.mubr.f32.mxu0 0.0
        %1003 = vmatmul.mubr.f32.gmra.mrb[0].mxu0 %v476
        %v1004 = vpop.f32.mrb[0].mxu0
        %v1005 = vadd.f32 %v449, %v1004
        %v1006 = vpop.f32.mrb[0].mxu0
        %v1007 = vadd.f32 %v449, %v1006
        %1008 = vmatprep.mubr.f32.mxu0 0.0
        %1009 = vmatmul.mubr.f32.gmra.mrb[0].mxu0 %v479
        %v1010 = vpop.f32.mrb[0].mxu0
        %v1011 = vadd.f32 %v454, %v1010
        %v1012 = vpop.f32.mrb[0].mxu0
        %v1013 = vadd.f32 %v454, %v1012
        %1014 = vdwg.mxu0
        %v1015 = vmax.f32 %v969, 0.0
        %v1016 = vmax.f32 %v971, 0.0
        %v1017 = vmax.f32 %v975, 0.0
        %v1018 = vmax.f32 %v977, 0.0
        %v1019 = vmax.f32 %v981, 0.0
        %v1020 = vmax.f32 %v983, 0.0
        %v1021 = vmax.f32 %v987, 0.0
        %v1022 = vmax.f32 %v989, 0.0
        %v1023 = vmax.f32 %v993, 0.0
        %v1024 = vmax.f32 %v995, 0.0
        %v1025 = vmax.f32 %v999, 0.0
        %v1026 = vmax.f32 %v1001, 0.0
        %v1027 = vmax.f32 %v1005, 0.0
        %v1028 = vmax.f32 %v1007, 0.0
        %v1029 = vmax.f32 %v1011, 0.0
        %v1030 = vmax.f32 %v1013, 0.0
        %1031 = vmatprep.subr.mxu0 %v1016
        %1032 = vmatpush1.msra.mxu0 %v1015
        %1033 = vmatprep.subr.mxu0 %v1018
        %1034 = vmatpush1.msra.mxu0 %v1017
        %1035 = vmatprep.subr.mxu0 %v1020
        %1036 = vmatpush1.msra.mxu0 %v1019
        %1037 = vmatprep.subr.mxu0 %v1022
        %1038 = vmatpush1.msra.mxu0 %v1021
        %1039 = vmatprep.subr.mxu0 %v1024
        %1040 = vmatpush1.msra.mxu0 %v1023
        %1041 = vmatprep.subr.mxu0 %v1026
        %1042 = vmatpush1.msra.mxu0 %v1025
        %1043 = vmatprep.subr.mxu0 %v1028
        %1044 = vmatpush1.msra.mxu0 %v1027
        %1045 = vmatprep.subr.mxu0 %v1030
        %1046 = vmatpush1.msra.mxu0 %v1029
        %1047 = vmatprep.subr.mxu0 0.0
        %1048 = vmatpush1.msra.mxu0 0.0
        %1049 = vmatprep.subr.mxu0 0.0
        %1050 = vmatpush1.msra.mxu0 0.0
        %1051 = vmatprep.subr.mxu0 0.0
        %1052 = vmatpush1.msra.mxu0 0.0
        %1053 = vmatprep.subr.mxu0 0.0
        %1054 = vmatpush1.msra.mxu0 0.0
        %1055 = vmatprep.subr.mxu0 0.0
        %1056 = vmatpush1.msra.mxu0 0.0
        %1057 = vmatprep.subr.mxu0 0.0
        %1058 = vmatpush1.msra.mxu0 0.0
        %1059 = vmatprep.subr.mxu0 0.0
        %1060 = vmatpush1.msra.mxu0 0.0
        %1061 = vmatprep.subr.mxu0 0.0
        %1062 = vmatpush1.msra.mxu0 0.0
        %1063 = vmatprep.subr.mxu0 0.0
        %1064 = vmatpush1.msra.mxu0 0.0
        %1065 = vmatprep.subr.mxu0 0.0
        %1066 = vmatpush1.msra.mxu0 0.0
        %1067 = vmatprep.subr.mxu0 0.0
        %1068 = vmatpush1.msra.mxu0 0.0
        %1069 = vmatprep.subr.mxu0 0.0
        %1070 = vmatpush1.msra.mxu0 0.0
        %1071 = vmatprep.subr.mxu0 0.0
        %1072 = vmatpush1.msra.mxu0 0.0
        %1073 = vmatprep.subr.mxu0 0.0
        %1074 = vmatpush1.msra.mxu0 0.0
        %1075 = vmatprep.subr.mxu0 0.0
        %1076 = vmatpush1.msra.mxu0 0.0
        %1077 = vmatprep.subr.mxu0 0.0
        %1078 = vmatpush1.msra.mxu0 0.0
        %1079 = vmatprep.subr.mxu0 0.0
        %1080 = vmatpush1.msra.mxu0 0.0
        %1081 = vmatprep.subr.mxu0 0.0
        %1082 = vmatpush1.msra.mxu0 0.0
        %1083 = vmatprep.subr.mxu0 0.0
        %1084 = vmatpush1.msra.mxu0 0.0
        %1085 = vmatprep.subr.mxu0 0.0
        %1086 = vmatpush1.msra.mxu0 0.0
        %1087 = vmatprep.subr.mxu0 0.0
        %1088 = vmatpush1.msra.mxu0 0.0
        %1089 = vmatprep.subr.mxu0 0.0
        %1090 = vmatpush1.msra.mxu0 0.0
        %1091 = vmatprep.subr.mxu0 0.0
        %1092 = vmatpush1.msra.mxu0 0.0
        %1093 = vmatprep.subr.mxu0 0.0
        %1094 = vmatpush1.msra.mxu0 0.0
        %1095 = vmatprep.mubr.f32.mxu0 0.0
        %1096 = vmatmul.mubr.f32.gmra.mrb[0].mxu0 %v642
        %v1097 = vpop.f32.mrb[0].mxu0
        %v1098 = vadd.f32 %v613, %v1097
        %v1099 = vpop.f32.mrb[0].mxu0
        %v1100 = vadd.f32 %v613, %v1099
        %1101 = vmatprep.mubr.f32.mxu0 0.0
        %1102 = vmatmul.mubr.f32.gmra.mrb[0].mxu0 %v645
        %v1103 = vpop.f32.mrb[0].mxu0
        %v1104 = vadd.f32 %v618, %v1103
        %v1105 = vpop.f32.mrb[0].mxu0
        %v1106 = vadd.f32 %v618, %v1105
        %1107 = vmatprep.mubr.f32.mxu0 0.0
        %1108 = vmatmul.mubr.f32.gmra.mrb[0].mxu0 %v648
        %v1109 = vpop.f32.mrb[0].mxu0
        %v1110 = vadd.f32 %v623, %v1109
        %v1111 = vpop.f32.mrb[0].mxu0
        %v1112 = vadd.f32 %v623, %v1111
        %1113 = vmatprep.mubr.f32.mxu0 0.0
        %1114 = vmatmul.mubr.f32.gmra.mrb[0].mxu0 %v651
        %v1115 = vpop.f32.mrb[0].mxu0
        %v1116 = vadd.f32 %v628, %v1115
        %v1117 = vpop.f32.mrb[0].mxu0
        %v1118 = vadd.f32 %v628, %v1117
        %1119 = vmatprep.mubr.f32.mxu0 0.0
        %1120 = vmatmul.mubr.f32.gmra.mrb[0].mxu0 %v654
        %v1121 = vpop.f32.mrb[0].mxu0
        %v1122 = vadd.f32 %v633, %v1121
        %v1123 = vpop.f32.mrb[0].mxu0
        %v1124 = vadd.f32 %v633, %v1123
        %1125 = vmatprep.mubr.f32.mxu0 0.0
        %1126 = vmatmul.mubr.f32.gmra.mrb[0].mxu0 %v657
        %v1127 = vpop.f32.mrb[0].mxu0
        %v1128 = vadd.f32 %v638, %v1127
        %v1129 = vpop.f32.mrb[0].mxu0
        %v1130 = vadd.f32 %v638, %v1129
        %1131 = vdwg.mxu0
        %v1132 = vmul.f32 %v1098, 0.5
        %v1133 = vmul.f32 %v1100, 0.5
        %v1134 = vtanh.pop %v1132
        %v1135 = vtanh.pop %v1133
        %v1136 = vmul.f32 %v1134, 0.5
        %v1137 = vmul.f32 %v1135, 0.5
        %v1138 = vadd.f32 %v1136, 0.5
        %v1139 = vadd.f32 %v1137, 0.5
        %v1141 = vlaneseq
        %v1142 = vshrl.u32 %v1141, 7
        %v1143 = vsub.s32 0, %v1142
        %v1144 = vrot.slane %v901, %v1143
        %v1145 = vlaneseq
        %v1146 = vshrl.u32 %v1145, 7
        %v1147 = vsub.s32 2, %v1146
        %v1148 = vrot.slane %v901, %v1147
        %v1151 = vlaneseq
        %v1152 = vshrl.u32 %v1151, 7
        %v1153 = vsub.s32 0, %v1152
        %v1154 = vrot.slane %v1144, %v1153
        %v1155 = vlaneseq
        %v1156 = vshrl.u32 %v1155, 7
        %v1157 = vsub.s32 0, %v1156
        %v1158 = vrot.slane %v1148, %v1157
        %v1159 = vmul.f32 %v771, %v1154
        %v1160 = vmul.f32 %v771, %v1158
        %v1161 = vlaneseq
        %v1162 = vshrl.u32 %v1161, 7
        %v1163 = vsub.s32 1, %v1162
        %v1164 = vrot.slane %v901, %v1163
        %v1165 = vlaneseq
        %v1166 = vshrl.u32 %v1165, 7
        %v1167 = vsub.s32 3, %v1166
        %v1168 = vrot.slane %v901, %v1167
        %v1171 = vlaneseq
        %v1172 = vshrl.u32 %v1171, 7
        %v1173 = vsub.s32 1, %v1172
        %v1174 = vrot.slane %v1164, %v1173
        %v1175 = vlaneseq
        %v1176 = vshrl.u32 %v1175, 7
        %v1177 = vsub.s32 1, %v1176
        %v1178 = vrot.slane %v1168, %v1177
        %v1179 = vmul.f32 %v797, %v1174
        %v1180 = vmul.f32 %v797, %v1178
        %v1181 = vadd.f32 %v1159, %v1179
        %v1182 = vadd.f32 %v1160, %v1180
        %v1183 = vmul.f32 %v1138, %v1181
        %v1184 = vmul.f32 %v1139, %v1182
        %s1185 = scalar_lea.vmem %s345, 8 [#allocation2]
        %v1186 = vld [vmem:[%s1185] sm:$0xff]
        %1187 = vmatprep.subr.mxu0 %v1106
        %1188 = vmatpush1.xpose.msra.mxu0 %v1104
        %1189 = vmatprep.subr.mxu0 %v1112
        %1190 = vmatpush1.xpose.msra.mxu0 %v1110
        %1191 = vmatprep.subr.mxu0 %v1118
        %1192 = vmatpush1.xpose.msra.mxu0 %v1116
        %1193 = vmatprep.subr.mxu0 %v1124
        %1194 = vmatpush1.xpose.msra.mxu0 %v1122
        %1195 = vmatprep.subr.mxu0 %v1130
        %1196 = vmatpush1.xpose.msra.mxu0 %v1128
        %1197 = vmatprep.subr.mxu0 0.0
        %1198 = vmatpush1.xpose.msra.mxu0 0.0
        %1199 = vmatprep.subr.mxu0 0.0
        %1200 = vmatpush1.xpose.msra.mxu0 0.0
        %1201 = vmatprep.subr.mxu0 0.0
        %1202 = vmatpush1.xpose.msra.mxu0 0.0
        %1203 = vmatprep.subr.mxu0 0.0
        %1204 = vmatpush1.xpose.msra.mxu0 0.0
        %1205 = vmatprep.subr.mxu0 0.0
        %1206 = vmatpush1.xpose.msra.mxu0 0.0
        %1207 = vmatprep.subr.mxu0 0.0
        %1208 = vmatpush1.xpose.msra.mxu0 0.0
        %1209 = vmatprep.subr.mxu0 0.0
        %1210 = vmatpush1.xpose.msra.mxu0 0.0
        %1211 = vmatprep.subr.mxu0 0.0
        %1212 = vmatpush1.xpose.msra.mxu0 0.0
        %1213 = vmatprep.subr.mxu0 0.0
        %1214 = vmatpush1.xpose.msra.mxu0 0.0
        %1215 = vmatprep.subr.mxu0 0.0
        %1216 = vmatpush1.xpose.msra.mxu0 0.0
        %1217 = vmatprep.subr.mxu0 0.0
        %1218 = vmatpush1.xpose.msra.mxu0 0.0
        %1219 = vmatprep.subr.mxu0 0.0
        %1220 = vmatpush1.xpose.msra.mxu0 0.0
        %1221 = vmatprep.subr.mxu0 0.0
        %1222 = vmatpush1.xpose.msra.mxu0 0.0
        %1223 = vmatprep.subr.mxu0 0.0
        %1224 = vmatpush1.xpose.msra.mxu0 0.0
        %1225 = vmatprep.subr.mxu0 0.0
        %1226 = vmatpush1.xpose.msra.mxu0 0.0
        %1227 = vmatprep.subr.mxu0 0.0
        %1228 = vmatpush1.xpose.msra.mxu0 0.0
        %1229 = vmatprep.subr.mxu0 0.0
        %1230 = vmatpush1.xpose.msra.mxu0 0.0
        %1231 = vmatprep.subr.mxu0 0.0
        %1232 = vmatpush1.xpose.msra.mxu0 0.0
        %1233 = vmatprep.subr.mxu0 0.0
        %1234 = vmatpush1.xpose.msra.mxu0 0.0
        %1235 = vmatprep.subr.mxu0 0.0
        %1236 = vmatpush1.xpose.msra.mxu0 0.0
        %1237 = vmatprep.subr.mxu0 0.0
        %1238 = vmatpush1.xpose.msra.mxu0 0.0
        %1239 = vmatprep.subr.mxu0 0.0
        %1240 = vmatpush1.xpose.msra.mxu0 0.0
        %1241 = vmatprep.subr.mxu0 0.0
        %1242 = vmatpush1.xpose.msra.mxu0 0.0
        %1243 = vmatprep.subr.mxu0 0.0
        %1244 = vmatpush1.xpose.msra.mxu0 0.0
        %1245 = vmatprep.subr.mxu0 0.0
        %1246 = vmatpush1.xpose.msra.mxu0 0.0
        %1247 = vmatprep.subr.mxu0 0.0
        %1248 = vmatpush1.xpose.msra.mxu0 0.0
        %1249 = vmatprep.subr.mxu0 0.0
        %1250 = vmatpush1.xpose.msra.mxu0 0.0
        %1251 = vmatprep.mubr.f32.mxu0 %v1184
        %1252 = vmatmul.mubr.f32.gmra.mrb[0].mxu0 %v1183
        %v1253 = vpop.f32.mrb[0].mxu0
        %v1254 = vadd.f32 0.0, %v1253
        %v1255 = vpop.f32.mrb[0].mxu0
        %1256 = vdwg.mxu0
        %v1257 = vadd.f32 %v1186, %v1254
        %1258 = vst.msk [vmem:[%s1185] sm:$0xff] %vm895, %v1257
        %s1259 = sand.u32 %s215, 1
        %s1260 = scalar_lea.sflag [#allocation3], %s1259
        %s1261 = sand.u32 %s215, 1
        %s1262 = smul.addr %s1261, 16
        %s1263 = scalar_lea.vmem [#allocation2], %s1262
        // Predicated region
        $region53: #{object_summarizer_forward.1} parent=47 // pred_check
          %p1264 = pneg %p225
        $region54: #{object_summarizer_forward.1} parent=47 // pred_check_branch
          %1266 = sbr.rel (%p1264) target = $region56
        $region55: #{object_summarizer_forward.1} parent=47 // pred_region
          %s1267 = smul.u32 2, %s27
          %s1269 = ssub.s32 256, 256
          %1270 = vsyncadd %s1260, %s1269
          %s1271 = smul.addr %s26, 4
          %s1272 = sadd.s32 %s1267, %s1271
          %s1273 = smul.addr %s1272, 128
          %s1274 = scalar_lea.hbm %s7, %s1273
          %s1275 = sshll.u32 %s1263, 4
          %s1276 = int_to_ptr.vmem [resolvable:$true] %s1275
          %1281 = dma.vmem_to_hbm [thread:$0]  %s1276, 256, %s1274, %s1260, 128, 128, 8
        $region56: #{object_summarizer_forward.1} parent=47 // pred_fallthru
          _
      $region48: #{object_summarizer_forward.1} parent=5 // pred_fallthru
        _
      %p1282 = scmp.le.s32.totalorder 2, %s16
      // Predicated region
      $region57: #{object_summarizer_forward.1} parent=5 // pred_check
        %p1283 = pneg %p1282
      $region58: #{object_summarizer_forward.1} parent=5 // pred_check_branch
        %1285 = sbr.rel (%p1283) target = $region60
      $region59: #{object_summarizer_forward.1} parent=5 // pred_region
        %s1286 = ssub.s32 %s16, 2
        // Predicated region
        $region61: #{object_summarizer_forward.1} parent=59 // pred_check
          %p1287 = pneg %p231
        $region62: #{object_summarizer_forward.1} parent=59 // pred_check_branch
          %1289 = sbr.rel (%p1287) target = $region64
        $region63: #{object_summarizer_forward.1} parent=59 // pred_region
          %s1290 = sand.u32 %s216, 1
          %s1291 = scalar_lea.sflag [#allocation3], %s1290
          %s1292 = sand.u32 %s216, 1
          %s1293 = smul.addr %s1292, 16
          %s1294 = scalar_lea.vmem [#allocation2], %s1293
          %1295 = dma.done %s1291, 256
        $region64: #{object_summarizer_forward.1} parent=59 // pred_fallthru
          _
      $region60: #{object_summarizer_forward.1} parent=5 // pred_fallthru
        _
    $region6: #{object_summarizer_forward.1} parent=1 // loop_footer
      %s20 = sadd.s32 1, %s16
    $region7: #{object_summarizer_forward.1} parent=1 // loop_footer_branch
      %15 = sbr.rel target = $region3
    $region8: #{object_summarizer_forward.1} parent=1 // loop_exit
      _
    %1296 = vsyncpa [#allocation3], 1
    %s1297 = scalar_lea.sflag [#allocation3], 1
    %1298 = vsyncpa %s1297, 1

</llo_original>
